<compile_context>
chip_gen: v6e
topology: v6e:2x2x1
jax: 0.10.0
libtpu: 0.0.40
codegen_flags: <defaults>
</compile_context>

<pallas_src>
import functools

import numpy as np
import jax
import jax.numpy as jnp
from jax.experimental import pallas as pl
from jax.experimental.pallas import tpu as pltpu

B_TILE_MAX = 256     # batch tile cap (keeps >=2 tiles on big batches for v7x megacore)
T_CHUNK_MAX = 32     # timesteps handled per LSTM grid step
ROW_TILE_MAX = 512   # row tile cap for the tiled GEMM kernels
LSTM_UNROLL = 8      # partial unroll of the in-kernel time loop


def _round_up(x, m):
    return ((x + m - 1) // m) * m


def _pick_tiles(B, T):
    b_tile = min(B_TILE_MAX, _round_up(B, 8))
    t_chunk = min(T_CHUNK_MAX, T)
    return b_tile, t_chunk


# ------------------------------------------------------------------
# Generic tiled linear kernel: out = x @ W + b
# Used for (a) the fused embedding+input-projection table and (b) the head.
# ------------------------------------------------------------------
def _linear_kernel(x_ref, w_ref, b_ref, o_ref):
    o_ref[...] = (jnp.dot(x_ref[...], w_ref[...],
                          preferred_element_type=jnp.float32)
                  + b_ref[...]).astype(o_ref.dtype)


def run_linear(x, w, b, *, out_dtype=jnp.float32, max_row_tile=ROW_TILE_MAX):
    """Row-tiled x @ w + b.  Rows are padded to a tile multiple internally;
    weights and bias are resident (full) blocks."""
    N, K = x.shape
    M = w.shape[-1]
    row_tile = min(max_row_tile, _round_up(N, 8))
    N_pad = _round_up(N, row_tile)
    if N_pad != N:
        x = jnp.pad(x, ((0, N_pad - N), (0, 0)))

    grid_spec = pltpu.PrefetchScalarGridSpec(
        num_scalar_prefetch=0,
        grid=(N_pad // row_tile,),
        in_specs=[
            pl.BlockSpec((row_tile, K), lambda i: (i, 0)),   # activations
            pl.BlockSpec((K, M), lambda i: (0, 0)),          # resident weights
            pl.BlockSpec((1, M), lambda i: (0, 0)),          # resident bias
        ],
        out_specs=pl.BlockSpec((row_tile, M), lambda i: (i, 0)),
    )
    ce = pl.CostEstimate(
        flops=2 * N_pad * K * M,
        transcendentals=0,
        bytes_accessed=int(N_pad * K * x.dtype.itemsize
                           + K * M * w.dtype.itemsize
                           + M * b.dtype.itemsize
                           + N_pad * M * jnp.dtype(out_dtype).itemsize),
    )
    out = pl.pallas_call(
        _linear_kernel,
        out_shape=jax.ShapeDtypeStruct((N_pad, M), out_dtype),
        grid_spec=grid_spec,
        compiler_params=pltpu.CompilerParams(
            dimension_semantics=("parallel",)),
        cost_estimate=ce,
    )(x, w, b)
    return out[:N]


# ------------------------------------------------------------------
# LSTM recurrence kernel (time-chunked).
# gx = x @ W_ih^T + (b_ih + b_hh) is precomputed (bf16); only h_prev @ W_hh^T
# (f32 operands) is evaluated inside the sequential loop.  Gate order matches
# PyTorch [i, f, g, o].  PackedSequence semantics: carries freeze and outputs
# are zero for t >= length.
# ------------------------------------------------------------------
def _lstm_kernel(gx_ref, len_ref, whh_ref, h0_ref, c0_ref,
                 out_ref, hT_ref, cT_ref, h_scr, c_scr):
    tc = pl.program_id(1)
    Tc = gx_ref.shape[0]
    H = h_scr.shape[-1]

    @pl.when(tc == 0)
    def _():
        h_scr[...] = h0_ref[...]
        c_scr[...] = c0_ref[...]

    lens = len_ref[...]          # (b_tile, 1) int32, resident
    whh = whh_ref[...]           # (H, 4H) f32, resident (f32 keeps recurrence drift low)

    def step(s, carry):
        t = tc * Tc + s                          # global timestep
        h_prev = h_scr[...]
        c_prev = c_scr[...]

        gates = gx_ref[s].astype(jnp.float32) + jnp.dot(
            h_prev, whh, preferred_element_type=jnp.float32)

        # Activate full (b_tile, 4H) vregs (lane-dense, 2 EUP passes), then
        # take static gate slices.
        sig = jax.nn.sigmoid(gates)
        th = jnp.tanh(gates)
        i_g = sig[:, 0 * H:1 * H]
        f_g = sig[:, 1 * H:2 * H]
        g_g = th[:, 2 * H:3 * H]
        o_g = sig[:, 3 * H:4 * H]

        c_new = f_g * c_prev + i_g * g_g
        h_new = o_g * jnp.tanh(c_new)

        valid = t < lens                         # (b_tile, 1) in-kernel mask
        h_scr[...] = jnp.where(valid, h_new, h_prev)
        c_scr[...] = jnp.where(valid, c_new, c_prev)
        out_ref[s] = jnp.where(valid, h_new, 0.0).astype(out_ref.dtype)
        return carry

    jax.lax.fori_loop(0, Tc, step, 0, unroll=min(LSTM_UNROLL, Tc))

    @pl.when(tc == pl.num_programs(1) - 1)
    def _():
        hT_ref[...] = h_scr[...]
        cT_ref[...] = c_scr[...]


def run_lstm(gx, lengths_2d, whh_t, h0, c0, *, t_chunk, b_tile):
    T_pad, B_pad, G = gx.shape
    H = h0.shape[-1]
    assert T_pad % t_chunk == 0 and B_pad % b_tile == 0

    # Explicit VMEM budget: double-buffered gx + out blocks plus margin for the
    # small resident blocks / scratch (portable to v7x's 64 MiB VMEM).
    gx_blk = t_chunk * b_tile * G * gx.dtype.itemsize
    out_blk = t_chunk * b_tile * H * 2               # bf16 per-step output block
    vmem_limit = int(min(2 * (gx_blk + out_blk) + (8 << 20), 48 << 20))

    out_shapes = (
        jax.ShapeDtypeStruct((T_pad, B_pad, H), jnp.bfloat16),   # per-step hidden (bf16)
        jax.ShapeDtypeStruct((B_pad, H), jnp.float32),           # final h
        jax.ShapeDtypeStruct((B_pad, H), jnp.float32),           # final c
    )
    grid_spec = pltpu.PrefetchScalarGridSpec(
        num_scalar_prefetch=0,
        grid=(B_pad // b_tile, T_pad // t_chunk),
        in_specs=[
            pl.BlockSpec((t_chunk, b_tile, G), lambda bi, tc: (tc, bi, 0)),  # gx (bf16)
            pl.BlockSpec((b_tile, 1), lambda bi, tc: (bi, 0)),               # lengths
            pl.BlockSpec((H, G), lambda bi, tc: (0, 0)),                     # W_hh^T (f32)
            pl.BlockSpec((b_tile, H), lambda bi, tc: (bi, 0)),               # h0
            pl.BlockSpec((b_tile, H), lambda bi, tc: (bi, 0)),               # c0
        ],
        out_specs=[
            pl.BlockSpec((t_chunk, b_tile, H), lambda bi, tc: (tc, bi, 0)),
            pl.BlockSpec((b_tile, H), lambda bi, tc: (bi, 0)),
            pl.BlockSpec((b_tile, H), lambda bi, tc: (bi, 0)),
        ],
        scratch_shapes=[pltpu.VMEM((b_tile, H), jnp.float32),
                        pltpu.VMEM((b_tile, H), jnp.float32)],
    )
    return pl.pallas_call(
        _lstm_kernel,
        out_shape=out_shapes,
        grid_spec=grid_spec,
        compiler_params=pltpu.CompilerParams(
            dimension_semantics=("parallel", "arbitrary"),
            vmem_limit_bytes=vmem_limit),
    )(gx, lengths_2d, whh_t, h0, c0)


# ------------------------------------------------------------------
# Full forward, mirroring LSModel.forward
# ------------------------------------------------------------------
@functools.partial(jax.jit, static_argnames=("b_tile", "t_chunk"))
def _forward_core(params, token_ids, lengths, h0, c0, gather_idx, *,
                  b_tile, t_chunk):
    B, T = token_ids.shape
    H = h0.shape[-1]
    B_pad = _round_up(B, b_tile)
    T_pad = _round_up(T, t_chunk)

    tok_p = jnp.pad(token_ids, ((0, B_pad - B), (0, T_pad - T)))
    len_p = jnp.pad(lengths.astype(jnp.int32), (0, B_pad - B)).reshape(B_pad, 1)
    h0_p = jnp.pad(h0, ((0, B_pad - B), (0, 0)))
    c0_p = jnp.pad(c0, ((0, B_pad - B), (0, 0)))

    # Fused embedding + input projection: one tiny GEMM builds the per-token
    # gate-preactivation table, then gx is a single gather in (T, B, 4H) order.
    table = run_linear(params['embed'], params['wih_t'], params['b_lstm'],
                       out_dtype=jnp.bfloat16)            # (VOCAB, 4H) bf16
    gx = jnp.take(table, tok_p.T, axis=0)                 # (T_pad, B_pad, 4H) bf16

    # Sequential recurrence (only h @ W_hh^T inside the loop).
    out_tbh, hT, cT = run_lstm(gx, len_p, params['whh_t'], h0_p, c0_p,
                               t_chunk=t_chunk, b_tile=b_tile)

    # Compact to PackedSequence row order BEFORE the dense head: only the valid
    # (b, t) rows (width H) go through the head GEMM.
    rows = jnp.take(out_tbh.reshape(T_pad * B_pad, H), gather_idx, axis=0)
    head = run_linear(rows, params['w_dense_t'].astype(jnp.bfloat16),
                      params['b_dense'])
    return head, hT[:B], cT[:B]


def ls_model_forward(params, token_ids, lengths, h0, c0):
    """Mirrors LSModel.forward on a padded (B, T) id batch with per-sequence
    valid `lengths` (PackedSequence semantics).  `lengths` should be host data
    (numpy / list), as produced by pack_padded_sequence, so the packed row
    count never forces a device->host sync."""
    # TODO(synk): if `lengths` arrives as a device array this np.asarray is the
    # one unavoidable host readback (the packed output row count is data-dependent).
    lengths_host = np.asarray(lengths).astype(np.int32)
    B, T = token_ids.shape
    b_tile, t_chunk = _pick_tiles(B, T)
    B_pad = _round_up(B, b_tile)

    n_valid = int(lengths_host.sum())
    if n_valid == 0:
        vocab = params['w_dense_t'].shape[-1]
        return jnp.zeros((0, vocab), jnp.float32), (h0[None], c0[None])

    # Packed (batch-major, time-within-sequence) row indices into the
    # time-major flattened (T_pad*B_pad, H) LSTM output — built on host.
    gather_idx = np.concatenate(
        [np.arange(int(l), dtype=np.int32) * B_pad + b
         for b, l in enumerate(lengths_host)]).astype(np.int32)

    head, hT, cT = _forward_core(params, token_ids, jnp.asarray(lengths_host),
                                 h0, c0, jnp.asarray(gather_idx),
                                 b_tile=b_tile, t_chunk=t_chunk)
    # torch.nn.LSTM returns (num_layers, B, H) hidden/cell states.
    return head, (hT[None], cT[None])


# ------------------------------------------------------------------
# Pure-JAX float32 reference (for correctness verification)
# ------------------------------------------------------------------
def reference_forward(params, token_ids, lengths, h0, c0):
    emb = params['embed'][token_ids]                 # (B, T, E)
    B, T, _ = emb.shape
    H = h0.shape[-1]
    wih, whh, b = params['wih_t'], params['whh_t'], params['b_lstm'][0]
    lengths = jnp.asarray(lengths)

    def step(carry, xs):
        h, c = carry
        x_t, t = xs
        gates = x_t @ wih + h @ whh + b
        i_g = jax.nn.sigmoid(gates[:, :H])
        f_g = jax.nn.sigmoid(gates[:, H:2 * H])
        g_g = jnp.tanh(gates[:, 2 * H:3 * H])
        o_g = jax.nn.sigmoid(gates[:, 3 * H:])
        c_new = f_g * c + i_g * g_g
        h_new = o_g * jnp.tanh(c_new)
        m = (t < lengths)[:, None]
        return (jnp.where(m, h_new, h), jnp.where(m, c_new, c)), \
            jnp.where(m, h_new, 0.0)

    xs = (jnp.transpose(emb, (1, 0, 2)), jnp.arange(T))
    (hT, cT), outs = jax.lax.scan(step, (h0, c0), xs)
    out_bth = jnp.transpose(outs, (1, 0, 2))
    rows = jnp.concatenate(
        [out_bth[i, :int(lengths[i]), :] for i in range(B)], axis=0)
    out_lin = rows @ params['w_dense_t'] + params['b_dense'][0]
    return out_lin, hT, cT


if __name__ == "__main__":
    key = jax.random.PRNGKey(0)
    VOCAB, E, H = 128, 16, 32
    B, T = 2, 8

    k = jax.random.split(key, 8)
    s = 1.0 / jnp.sqrt(jnp.float32(H))
    params = {
        'embed':     jax.random.normal(k[0], (VOCAB, E), jnp.float32) * 0.1,
        'wih_t':     jax.random.uniform(k[1], (E, 4 * H), jnp.float32, -s, s),
        'whh_t':     jax.random.uniform(k[2], (H, 4 * H), jnp.float32, -s, s),
        # combined b_ih + b_hh
        'b_lstm':    jax.random.uniform(k[3], (1, 4 * H), jnp.float32, -2 * s, 2 * s),
        'w_dense_t': jax.random.uniform(k[4], (H, VOCAB), jnp.float32, -s, s),
        'b_dense':   jax.random.uniform(k[5], (1, VOCAB), jnp.float32, -s, s),
    }

    token_ids = jax.random.randint(k[6], (B, T), 0, VOCAB)   # padded (B, T) ids
    lengths = np.array([T, 5], dtype=np.int32)               # host-side valid lengths

    h0 = jnp.zeros((B, H), jnp.float32)
    c0 = jnp.zeros((B, H), jnp.float32)

    out_linear, (hT, cT) = ls_model_forward(params, token_ids, lengths, h0, c0)
    jax.block_until_ready((out_linear, hT, cT))

    assert out_linear.shape == (int(lengths.sum()), VOCAB)
    assert hT.shape == (1, B, H) and cT.shape == (1, B, H)

    # Numerical check vs float32 reference (bf16 gx / hidden writeback -> loose tol).
    ref_out, ref_h, ref_c = reference_forward(params, token_ids, lengths, h0, c0)
    assert jnp.allclose(out_linear, ref_out, atol=5e-2, rtol=5e-2)
    assert jnp.allclose(hT[0], ref_h, atol=5e-2, rtol=5e-2)
    assert jnp.allclose(cT[0], ref_c, atol=5e-2, rtol=5e-2)

    print("KERNEL_OK")
</pallas_src>

<mosaic_0001>
module attributes {stable_mosaic.version = 11 : i64} {
  func.func @_linear_kernel(%arg0: i32, %arg1: memref<128x16xf32, #tpu.memory_space<vmem>>, %arg2: memref<16x128xf32, #tpu.memory_space<vmem>>, %arg3: memref<1x128xf32, #tpu.memory_space<vmem>>, %arg4: memref<128x128xbf16, #tpu.memory_space<vmem>>) attributes {dimension_semantics = [#tpu.dimension_semantics<parallel>], iteration_bounds = array<i64: 1>, scalar_prefetch = 0 : i64, scratch_operands = 0 : i64, tpu.core_type = #tpu.core_type<tc>, window_params = [{transform_indices = @transform_0, window_bounds = array<i64: 128, 16>}, {pipeline_mode = #tpu.pipeline_mode<synchronous>, transform_indices = @transform_1, window_bounds = array<i64: 16, 128>}, {pipeline_mode = #tpu.pipeline_mode<synchronous>, transform_indices = @transform_2, window_bounds = array<i64: 1, 128>}, {transform_indices = @transform_3, window_bounds = array<i64: 128, 128>}]} {
    %c0 = arith.constant 0 : index
    %c0_0 = arith.constant 0 : index
    %0 = vector.load %arg1[%c0, %c0_0] : memref<128x16xf32, #tpu.memory_space<vmem>>, vector<128x16xf32>
    %c0_1 = arith.constant 0 : index
    %c0_2 = arith.constant 0 : index
    %1 = vector.load %arg2[%c0_1, %c0_2] : memref<16x128xf32, #tpu.memory_space<vmem>>, vector<16x128xf32>
    %cst = arith.constant dense<0.000000e+00> : vector<128x128xf32>
    %2 = tpu.matmul %0, %1, %cst {dimension_numbers = #tpu.dot_dimension_numbers<[1], [0], [0], [1], [0, 0, 1, 1], [], []>} : vector<128x16xf32>, vector<16x128xf32>, vector<128x128xf32> -> vector<128x128xf32>
    %c0_3 = arith.constant 0 : index
    %c0_4 = arith.constant 0 : index
    %3 = vector.load %arg3[%c0_3, %c0_4] : memref<1x128xf32, #tpu.memory_space<vmem>>, vector<1x128xf32>
    %4 = vector.broadcast %3 : vector<1x128xf32> to vector<128x128xf32>
    %5 = arith.addf %2, %4 : vector<128x128xf32>
    %6 = arith.truncf %5 : vector<128x128xf32> to vector<128x128xbf16>
    %c0_5 = arith.constant 0 : index
    %c0_6 = arith.constant 0 : index
    %7 = vector.load %arg4[%c0_5, %c0_6] : memref<128x128xbf16, #tpu.memory_space<vmem>>, vector<128x128xbf16>
    tpu.vector_store %arg4[%c0_5, %c0_6], %6 {strides = array<i32>} : memref<128x128xbf16, #tpu.memory_space<vmem>>, vector<128x128xbf16>,
    return
  }
  func.func @transform_0(%arg0: i32) -> (i32, i32) {
    %c0_i32 = arith.constant 0 : i32
    %c0_i32_0 = arith.constant 0 : i32
    return %arg0, %c0_i32 : i32, i32
  }
  func.func @transform_1(%arg0: i32) -> (i32, i32) {
    %c0_i32 = arith.constant 0 : i32
    %c0_i32_0 = arith.constant 0 : i32
    %c0_i32_1 = arith.constant 0 : i32
    return %c0_i32, %c0_i32_0 : i32, i32
  }
  func.func @transform_2(%arg0: i32) -> (i32, i32) {
    %c0_i32 = arith.constant 0 : i32
    %c0_i32_0 = arith.constant 0 : i32
    %c0_i32_1 = arith.constant 0 : i32
    return %c0_i32, %c0_i32_0 : i32, i32
  }
  func.func @transform_3(%arg0: i32) -> (i32, i32) {
    %c0_i32 = arith.constant 0 : i32
    %c0_i32_0 = arith.constant 0 : i32
    return %arg0, %c0_i32 : i32, i32
  }
}

module attributes {stable_mosaic.version = 11 : i64} {
  func.func @_lstm_kernel(%arg0: i32, %arg1: i32, %arg2: memref<8x8x128xbf16, #tpu.memory_space<vmem>>, %arg3: memref<8x1xi32, #tpu.memory_space<vmem>>, %arg4: memref<32x128xf32, #tpu.memory_space<vmem>>, %arg5: memref<8x32xf32, #tpu.memory_space<vmem>>, %arg6: memref<8x32xf32, #tpu.memory_space<vmem>>, %arg7: memref<8x8x32xbf16, #tpu.memory_space<vmem>>, %arg8: memref<8x32xf32, #tpu.memory_space<vmem>>, %arg9: memref<8x32xf32, #tpu.memory_space<vmem>>, %arg10: memref<8x32xf32, #tpu.memory_space<vmem>>, %arg11: memref<8x32xf32, #tpu.memory_space<vmem>>) attributes {dimension_semantics = [#tpu.dimension_semantics<parallel>, #tpu.dimension_semantics<arbitrary>], iteration_bounds = array<i64: 1, 1>, scalar_prefetch = 0 : i64, scratch_operands = 2 : i64, tpu.core_type = #tpu.core_type<tc>, window_params = [{transform_indices = @transform_0, window_bounds = array<i64: 8, 8, 128>}, {transform_indices = @transform_1, window_bounds = array<i64: 8, 1>}, {pipeline_mode = #tpu.pipeline_mode<synchronous>, transform_indices = @transform_2, window_bounds = array<i64: 32, 128>}, {transform_indices = @transform_3, window_bounds = array<i64: 8, 32>}, {transform_indices = @transform_4, window_bounds = array<i64: 8, 32>}, {transform_indices = @transform_5, window_bounds = array<i64: 8, 8, 32>}, {transform_indices = @transform_6, window_bounds = array<i64: 8, 32>}, {transform_indices = @transform_7, window_bounds = array<i64: 8, 32>}]} {
    %c0_i32 = arith.constant 0 : i32
    %0 = arith.cmpi eq, %arg1, %c0_i32 : i32
    %1 = arith.extui %0 : i1 to i32
    %c0_i32_0 = arith.constant 0 : i32
    %2 = arith.cmpi ne, %1, %c0_i32_0 : i32
    scf.if %2 {
      %c0_134 = arith.constant 0 : index
      %c0_135 = arith.constant 0 : index
      %360 = vector.load %arg5[%c0_134, %c0_135] : memref<8x32xf32, #tpu.memory_space<vmem>>, vector<8x32xf32>
      %c0_136 = arith.constant 0 : index
      %c0_137 = arith.constant 0 : index
      %361 = vector.load %arg10[%c0_136, %c0_137] : memref<8x32xf32, #tpu.memory_space<vmem>>, vector<8x32xf32>
      tpu.vector_store %arg10[%c0_136, %c0_137], %360 {strides = array<i32>} : memref<8x32xf32, #tpu.memory_space<vmem>>, vector<8x32xf32>,
      %c0_138 = arith.constant 0 : index
      %c0_139 = arith.constant 0 : index
      %362 = vector.load %arg6[%c0_138, %c0_139] : memref<8x32xf32, #tpu.memory_space<vmem>>, vector<8x32xf32>
      %c0_140 = arith.constant 0 : index
      %c0_141 = arith.constant 0 : index
      %363 = vector.load %arg11[%c0_140, %c0_141] : memref<8x32xf32, #tpu.memory_space<vmem>>, vector<8x32xf32>
      tpu.vector_store %arg11[%c0_140, %c0_141], %362 {strides = array<i32>} : memref<8x32xf32, #tpu.memory_space<vmem>>, vector<8x32xf32>,
    } else {
    }
    %c0 = arith.constant 0 : index
    %c0_1 = arith.constant 0 : index
    %3 = vector.load %arg3[%c0, %c0_1] : memref<8x1xi32, #tpu.memory_space<vmem>>, vector<8x1xi32>
    %c0_2 = arith.constant 0 : index
    %c0_3 = arith.constant 0 : index
    %4 = vector.load %arg4[%c0_2, %c0_3] : memref<32x128xf32, #tpu.memory_space<vmem>>, vector<32x128xf32>
    %c0_i32_4 = arith.constant 0 : i32
    %c8_i32 = arith.constant 8 : i32
    %5 = arith.muli %arg1, %c8_i32 : i32
    %6 = arith.addi %5, %c0_i32_4 : i32
    %c0_5 = arith.constant 0 : index
    %c0_6 = arith.constant 0 : index
    %7 = vector.load %arg10[%c0_5, %c0_6] : memref<8x32xf32, #tpu.memory_space<vmem>>, vector<8x32xf32>
    %c0_7 = arith.constant 0 : index
    %c0_8 = arith.constant 0 : index
    %8 = vector.load %arg11[%c0_7, %c0_8] : memref<8x32xf32, #tpu.memory_space<vmem>>, vector<8x32xf32>
    %9 = arith.index_cast %c0_i32_4 : i32 to index
    %c0_9 = arith.constant 0 : index
    %c0_10 = arith.constant 0 : index
    %10 = vector.load %arg2[%9, %c0_9, %c0_10] : memref<8x8x128xbf16, #tpu.memory_space<vmem>>, vector<1x8x128xbf16>
    %11 = vector.shape_cast %10 : vector<1x8x128xbf16> to vector<8x128xbf16>
    %12 = arith.extf %11 : vector<8x128xbf16> to vector<8x128xf32>
    %cst = arith.constant dense<0.000000e+00> : vector<8x128xf32>
    %13 = tpu.matmul %7, %4, %cst {dimension_numbers = #tpu.dot_dimension_numbers<[1], [0], [0], [1], [0, 0, 1, 1], [], []>} : vector<8x32xf32>, vector<32x128xf32>, vector<8x128xf32> -> vector<8x128xf32>
    %14 = arith.addf %12, %13 : vector<8x128xf32>
    %15 = arith.negf %14 : vector<8x128xf32>
    %16 = math.exp %15 : vector<8x128xf32>
    %cst_11 = arith.constant 1.000000e+00 : f32
    %17 = vector.broadcast %cst_11 : f32 to vector<8x128xf32>
    %18 = arith.addf %17, %16 : vector<8x128xf32>
    %19 = arith.divf %17, %18 : vector<8x128xf32>
    %20 = math.tanh %14 : vector<8x128xf32>
    %21 = vector.extract_strided_slice %19 {offsets = [0, 0], sizes = [8, 32], strides = [1, 1]} : vector<8x128xf32> to vector<8x32xf32>
    %22 = vector.extract_strided_slice %19 {offsets = [0, 32], sizes = [8, 32], strides = [1, 1]} : vector<8x128xf32> to vector<8x32xf32>
    %23 = vector.extract_strided_slice %20 {offsets = [0, 64], sizes = [8, 32], strides = [1, 1]} : vector<8x128xf32> to vector<8x32xf32>
    %24 = vector.extract_strided_slice %19 {offsets = [0, 96], sizes = [8, 32], strides = [1, 1]} : vector<8x128xf32> to vector<8x32xf32>
    %25 = arith.mulf %22, %8 : vector<8x32xf32>
    %26 = arith.mulf %21, %23 : vector<8x32xf32>
    %27 = arith.addf %25, %26 : vector<8x32xf32>
    %28 = math.tanh %27 : vector<8x32xf32>
    %29 = arith.mulf %24, %28 : vector<8x32xf32>
    %30 = vector.broadcast %6 : i32 to vector<8x1xi32>
    %31 = arith.cmpi slt, %30, %3 : vector<8x1xi32>
    %32 = vector.shape_cast %31 : vector<8x1xi1> to vector<8x1xi1>
    %33 = vector.broadcast %32 : vector<8x1xi1> to vector<8x32xi1>
    %34 = arith.select %33, %29, %7 : vector<8x32xi1>, vector<8x32xf32>
    %c0_12 = arith.constant 0 : index
    %c0_13 = arith.constant 0 : index
    %35 = vector.load %arg10[%c0_12, %c0_13] : memref<8x32xf32, #tpu.memory_space<vmem>>, vector<8x32xf32>
    tpu.vector_store %arg10[%c0_12, %c0_13], %34 {strides = array<i32>} : memref<8x32xf32, #tpu.memory_space<vmem>>, vector<8x32xf32>,
    %36 = vector.shape_cast %31 : vector<8x1xi1> to vector<8x1xi1>
    %37 = vector.broadcast %36 : vector<8x1xi1> to vector<8x32xi1>
    %38 = arith.select %37, %27, %8 : vector<8x32xi1>, vector<8x32xf32>
    %c0_14 = arith.constant 0 : index
    %c0_15 = arith.constant 0 : index
    %39 = vector.load %arg11[%c0_14, %c0_15] : memref<8x32xf32, #tpu.memory_space<vmem>>, vector<8x32xf32>
    tpu.vector_store %arg11[%c0_14, %c0_15], %38 {strides = array<i32>} : memref<8x32xf32, #tpu.memory_space<vmem>>, vector<8x32xf32>,
    %cst_16 = arith.constant 0.000000e+00 : f32
    %40 = vector.shape_cast %31 : vector<8x1xi1> to vector<8x1xi1>
    %41 = vector.broadcast %40 : vector<8x1xi1> to vector<8x32xi1>
    %42 = vector.broadcast %cst_16 : f32 to vector<8x32xf32>
    %43 = arith.select %41, %29, %42 : vector<8x32xi1>, vector<8x32xf32>
    %44 = arith.truncf %43 : vector<8x32xf32> to vector<8x32xbf16>
    %45 = arith.index_cast %c0_i32_4 : i32 to index
    %c0_17 = arith.constant 0 : index
    %c0_18 = arith.constant 0 : index
    %46 = vector.load %arg7[%45, %c0_17, %c0_18] : memref<8x8x32xbf16, #tpu.memory_space<vmem>>, vector<1x8x32xbf16>
    %47 = vector.shape_cast %46 : vector<1x8x32xbf16> to vector<8x32xbf16>
    %48 = vector.shape_cast %44 : vector<8x32xbf16> to vector<1x8x32xbf16>
    tpu.vector_store %arg7[%45, %c0_17, %c0_18], %48 {strides = array<i32>} : memref<8x8x32xbf16, #tpu.memory_space<vmem>>, vector<1x8x32xbf16>,
    %c1_i32 = arith.constant 1 : i32
    %c8_i32_19 = arith.constant 8 : i32
    %49 = arith.muli %arg1, %c8_i32_19 : i32
    %50 = arith.addi %49, %c1_i32 : i32
    %c0_20 = arith.constant 0 : index
    %c0_21 = arith.constant 0 : index
    %51 = vector.load %arg10[%c0_20, %c0_21] : memref<8x32xf32, #tpu.memory_space<vmem>>, vector<8x32xf32>
    %c0_22 = arith.constant 0 : index
    %c0_23 = arith.constant 0 : index
    %52 = vector.load %arg11[%c0_22, %c0_23] : memref<8x32xf32, #tpu.memory_space<vmem>>, vector<8x32xf32>
    %53 = arith.index_cast %c1_i32 : i32 to index
    %c0_24 = arith.constant 0 : index
    %c0_25 = arith.constant 0 : index
    %54 = vector.load %arg2[%53, %c0_24, %c0_25] : memref<8x8x128xbf16, #tpu.memory_space<vmem>>, vector<1x8x128xbf16>
    %55 = vector.shape_cast %54 : vector<1x8x128xbf16> to vector<8x128xbf16>
    %56 = arith.extf %55 : vector<8x128xbf16> to vector<8x128xf32>
    %cst_26 = arith.constant dense<0.000000e+00> : vector<8x128xf32>
    %57 = tpu.matmul %51, %4, %cst_26 {dimension_numbers = #tpu.dot_dimension_numbers<[1], [0], [0], [1], [0, 0, 1, 1], [], []>} : vector<8x32xf32>, vector<32x128xf32>, vector<8x128xf32> -> vector<8x128xf32>
    %58 = arith.addf %56, %57 : vector<8x128xf32>
    %59 = arith.negf %58 : vector<8x128xf32>
    %60 = math.exp %59 : vector<8x128xf32>
    %cst_27 = arith.constant 1.000000e+00 : f32
    %61 = vector.broadcast %cst_27 : f32 to vector<8x128xf32>
    %62 = arith.addf %61, %60 : vector<8x128xf32>
    %63 = arith.divf %61, %62 : vector<8x128xf32>
    %64 = math.tanh %58 : vector<8x128xf32>
    %65 = vector.extract_strided_slice %63 {offsets = [0, 0], sizes = [8, 32], strides = [1, 1]} : vector<8x128xf32> to vector<8x32xf32>
    %66 = vector.extract_strided_slice %63 {offsets = [0, 32], sizes = [8, 32], strides = [1, 1]} : vector<8x128xf32> to vector<8x32xf32>
    %67 = vector.extract_strided_slice %64 {offsets = [0, 64], sizes = [8, 32], strides = [1, 1]} : vector<8x128xf32> to vector<8x32xf32>
    %68 = vector.extract_strided_slice %63 {offsets = [0, 96], sizes = [8, 32], strides = [1, 1]} : vector<8x128xf32> to vector<8x32xf32>
    %69 = arith.mulf %66, %52 : vector<8x32xf32>
    %70 = arith.mulf %65, %67 : vector<8x32xf32>
    %71 = arith.addf %69, %70 : vector<8x32xf32>
    %72 = math.tanh %71 : vector<8x32xf32>
    %73 = arith.mulf %68, %72 : vector<8x32xf32>
    %74 = vector.broadcast %50 : i32 to vector<8x1xi32>
    %75 = arith.cmpi slt, %74, %3 : vector<8x1xi32>
    %76 = vector.shape_cast %75 : vector<8x1xi1> to vector<8x1xi1>
    %77 = vector.broadcast %76 : vector<8x1xi1> to vector<8x32xi1>
    %78 = arith.select %77, %73, %51 : vector<8x32xi1>, vector<8x32xf32>
    %c0_28 = arith.constant 0 : index
    %c0_29 = arith.constant 0 : index
    %79 = vector.load %arg10[%c0_28, %c0_29] : memref<8x32xf32, #tpu.memory_space<vmem>>, vector<8x32xf32>
    tpu.vector_store %arg10[%c0_28, %c0_29], %78 {strides = array<i32>} : memref<8x32xf32, #tpu.memory_space<vmem>>, vector<8x32xf32>,
    %80 = vector.shape_cast %75 : vector<8x1xi1> to vector<8x1xi1>
    %81 = vector.broadcast %80 : vector<8x1xi1> to vector<8x32xi1>
    %82 = arith.select %81, %71, %52 : vector<8x32xi1>, vector<8x32xf32>
    %c0_30 = arith.constant 0 : index
    %c0_31 = arith.constant 0 : index
    %83 = vector.load %arg11[%c0_30, %c0_31] : memref<8x32xf32, #tpu.memory_space<vmem>>, vector<8x32xf32>
    tpu.vector_store %arg11[%c0_30, %c0_31], %82 {strides = array<i32>} : memref<8x32xf32, #tpu.memory_space<vmem>>, vector<8x32xf32>,
    %cst_32 = arith.constant 0.000000e+00 : f32
    %84 = vector.shape_cast %75 : vector<8x1xi1> to vector<8x1xi1>
    %85 = vector.broadcast %84 : vector<8x1xi1> to vector<8x32xi1>
    %86 = vector.broadcast %cst_32 : f32 to vector<8x32xf32>
    %87 = arith.select %85, %73, %86 : vector<8x32xi1>, vector<8x32xf32>
    %88 = arith.truncf %87 : vector<8x32xf32> to vector<8x32xbf16>
    %89 = arith.index_cast %c1_i32 : i32 to index
    %c0_33 = arith.constant 0 : index
    %c0_34 = arith.constant 0 : index
    %90 = vector.load %arg7[%89, %c0_33, %c0_34] : memref<8x8x32xbf16, #tpu.memory_space<vmem>>, vector<1x8x32xbf16>
    %91 = vector.shape_cast %90 : vector<1x8x32xbf16> to vector<8x32xbf16>
    %92 = vector.shape_cast %88 : vector<8x32xbf16> to vector<1x8x32xbf16>
    tpu.vector_store %arg7[%89, %c0_33, %c0_34], %92 {strides = array<i32>} : memref<8x8x32xbf16, #tpu.memory_space<vmem>>, vector<1x8x32xbf16>,
    %c2_i32 = arith.constant 2 : i32
    %c8_i32_35 = arith.constant 8 : i32
    %93 = arith.muli %arg1, %c8_i32_35 : i32
    %94 = arith.addi %93, %c2_i32 : i32
    %c0_36 = arith.constant 0 : index
    %c0_37 = arith.constant 0 : index
    %95 = vector.load %arg10[%c0_36, %c0_37] : memref<8x32xf32, #tpu.memory_space<vmem>>, vector<8x32xf32>
    %c0_38 = arith.constant 0 : index
    %c0_39 = arith.constant 0 : index
    %96 = vector.load %arg11[%c0_38, %c0_39] : memref<8x32xf32, #tpu.memory_space<vmem>>, vector<8x32xf32>
    %97 = arith.index_cast %c2_i32 : i32 to index
    %c0_40 = arith.constant 0 : index
    %c0_41 = arith.constant 0 : index
    %98 = vector.load %arg2[%97, %c0_40, %c0_41] : memref<8x8x128xbf16, #tpu.memory_space<vmem>>, vector<1x8x128xbf16>
    %99 = vector.shape_cast %98 : vector<1x8x128xbf16> to vector<8x128xbf16>
    %100 = arith.extf %99 : vector<8x128xbf16> to vector<8x128xf32>
    %cst_42 = arith.constant dense<0.000000e+00> : vector<8x128xf32>
    %101 = tpu.matmul %95, %4, %cst_42 {dimension_numbers = #tpu.dot_dimension_numbers<[1], [0], [0], [1], [0, 0, 1, 1], [], []>} : vector<8x32xf32>, vector<32x128xf32>, vector<8x128xf32> -> vector<8x128xf32>
    %102 = arith.addf %100, %101 : vector<8x128xf32>
    %103 = arith.negf %102 : vector<8x128xf32>
    %104 = math.exp %103 : vector<8x128xf32>
    %cst_43 = arith.constant 1.000000e+00 : f32
    %105 = vector.broadcast %cst_43 : f32 to vector<8x128xf32>
    %106 = arith.addf %105, %104 : vector<8x128xf32>
    %107 = arith.divf %105, %106 : vector<8x128xf32>
    %108 = math.tanh %102 : vector<8x128xf32>
    %109 = vector.extract_strided_slice %107 {offsets = [0, 0], sizes = [8, 32], strides = [1, 1]} : vector<8x128xf32> to vector<8x32xf32>
    %110 = vector.extract_strided_slice %107 {offsets = [0, 32], sizes = [8, 32], strides = [1, 1]} : vector<8x128xf32> to vector<8x32xf32>
    %111 = vector.extract_strided_slice %108 {offsets = [0, 64], sizes = [8, 32], strides = [1, 1]} : vector<8x128xf32> to vector<8x32xf32>
    %112 = vector.extract_strided_slice %107 {offsets = [0, 96], sizes = [8, 32], strides = [1, 1]} : vector<8x128xf32> to vector<8x32xf32>
    %113 = arith.mulf %110, %96 : vector<8x32xf32>
    %114 = arith.mulf %109, %111 : vector<8x32xf32>
    %115 = arith.addf %113, %114 : vector<8x32xf32>
    %116 = math.tanh %115 : vector<8x32xf32>
    %117 = arith.mulf %112, %116 : vector<8x32xf32>
    %118 = vector.broadcast %94 : i32 to vector<8x1xi32>
    %119 = arith.cmpi slt, %118, %3 : vector<8x1xi32>
    %120 = vector.shape_cast %119 : vector<8x1xi1> to vector<8x1xi1>
    %121 = vector.broadcast %120 : vector<8x1xi1> to vector<8x32xi1>
    %122 = arith.select %121, %117, %95 : vector<8x32xi1>, vector<8x32xf32>
    %c0_44 = arith.constant 0 : index
    %c0_45 = arith.constant 0 : index
    %123 = vector.load %arg10[%c0_44, %c0_45] : memref<8x32xf32, #tpu.memory_space<vmem>>, vector<8x32xf32>
    tpu.vector_store %arg10[%c0_44, %c0_45], %122 {strides = array<i32>} : memref<8x32xf32, #tpu.memory_space<vmem>>, vector<8x32xf32>,
    %124 = vector.shape_cast %119 : vector<8x1xi1> to vector<8x1xi1>
    %125 = vector.broadcast %124 : vector<8x1xi1> to vector<8x32xi1>
    %126 = arith.select %125, %115, %96 : vector<8x32xi1>, vector<8x32xf32>
    %c0_46 = arith.constant 0 : index
    %c0_47 = arith.constant 0 : index
    %127 = vector.load %arg11[%c0_46, %c0_47] : memref<8x32xf32, #tpu.memory_space<vmem>>, vector<8x32xf32>
    tpu.vector_store %arg11[%c0_46, %c0_47], %126 {strides = array<i32>} : memref<8x32xf32, #tpu.memory_space<vmem>>, vector<8x32xf32>,
    %cst_48 = arith.constant 0.000000e+00 : f32
    %128 = vector.shape_cast %119 : vector<8x1xi1> to vector<8x1xi1>
    %129 = vector.broadcast %128 : vector<8x1xi1> to vector<8x32xi1>
    %130 = vector.broadcast %cst_48 : f32 to vector<8x32xf32>
    %131 = arith.select %129, %117, %130 : vector<8x32xi1>, vector<8x32xf32>
    %132 = arith.truncf %131 : vector<8x32xf32> to vector<8x32xbf16>
    %133 = arith.index_cast %c2_i32 : i32 to index
    %c0_49 = arith.constant 0 : index
    %c0_50 = arith.constant 0 : index
    %134 = vector.load %arg7[%133, %c0_49, %c0_50] : memref<8x8x32xbf16, #tpu.memory_space<vmem>>, vector<1x8x32xbf16>
    %135 = vector.shape_cast %134 : vector<1x8x32xbf16> to vector<8x32xbf16>
    %136 = vector.shape_cast %132 : vector<8x32xbf16> to vector<1x8x32xbf16>
    tpu.vector_store %arg7[%133, %c0_49, %c0_50], %136 {strides = array<i32>} : memref<8x8x32xbf16, #tpu.memory_space<vmem>>, vector<1x8x32xbf16>,
    %c3_i32 = arith.constant 3 : i32
    %c8_i32_51 = arith.constant 8 : i32
    %137 = arith.muli %arg1, %c8_i32_51 : i32
    %138 = arith.addi %137, %c3_i32 : i32
    %c0_52 = arith.constant 0 : index
    %c0_53 = arith.constant 0 : index
    %139 = vector.load %arg10[%c0_52, %c0_53] : memref<8x32xf32, #tpu.memory_space<vmem>>, vector<8x32xf32>
    %c0_54 = arith.constant 0 : index
    %c0_55 = arith.constant 0 : index
    %140 = vector.load %arg11[%c0_54, %c0_55] : memref<8x32xf32, #tpu.memory_space<vmem>>, vector<8x32xf32>
    %141 = arith.index_cast %c3_i32 : i32 to index
    %c0_56 = arith.constant 0 : index
    %c0_57 = arith.constant 0 : index
    %142 = vector.load %arg2[%141, %c0_56, %c0_57] : memref<8x8x128xbf16, #tpu.memory_space<vmem>>, vector<1x8x128xbf16>
    %143 = vector.shape_cast %142 : vector<1x8x128xbf16> to vector<8x128xbf16>
    %144 = arith.extf %143 : vector<8x128xbf16> to vector<8x128xf32>
    %cst_58 = arith.constant dense<0.000000e+00> : vector<8x128xf32>
    %145 = tpu.matmul %139, %4, %cst_58 {dimension_numbers = #tpu.dot_dimension_numbers<[1], [0], [0], [1], [0, 0, 1, 1], [], []>} : vector<8x32xf32>, vector<32x128xf32>, vector<8x128xf32> -> vector<8x128xf32>
    %146 = arith.addf %144, %145 : vector<8x128xf32>
    %147 = arith.negf %146 : vector<8x128xf32>
    %148 = math.exp %147 : vector<8x128xf32>
    %cst_59 = arith.constant 1.000000e+00 : f32
    %149 = vector.broadcast %cst_59 : f32 to vector<8x128xf32>
    %150 = arith.addf %149, %148 : vector<8x128xf32>
    %151 = arith.divf %149, %150 : vector<8x128xf32>
    %152 = math.tanh %146 : vector<8x128xf32>
    %153 = vector.extract_strided_slice %151 {offsets = [0, 0], sizes = [8, 32], strides = [1, 1]} : vector<8x128xf32> to vector<8x32xf32>
    %154 = vector.extract_strided_slice %151 {offsets = [0, 32], sizes = [8, 32], strides = [1, 1]} : vector<8x128xf32> to vector<8x32xf32>
    %155 = vector.extract_strided_slice %152 {offsets = [0, 64], sizes = [8, 32], strides = [1, 1]} : vector<8x128xf32> to vector<8x32xf32>
    %156 = vector.extract_strided_slice %151 {offsets = [0, 96], sizes = [8, 32], strides = [1, 1]} : vector<8x128xf32> to vector<8x32xf32>
    %157 = arith.mulf %154, %140 : vector<8x32xf32>
    %158 = arith.mulf %153, %155 : vector<8x32xf32>
    %159 = arith.addf %157, %158 : vector<8x32xf32>
    %160 = math.tanh %159 : vector<8x32xf32>
    %161 = arith.mulf %156, %160 : vector<8x32xf32>
    %162 = vector.broadcast %138 : i32 to vector<8x1xi32>
    %163 = arith.cmpi slt, %162, %3 : vector<8x1xi32>
    %164 = vector.shape_cast %163 : vector<8x1xi1> to vector<8x1xi1>
    %165 = vector.broadcast %164 : vector<8x1xi1> to vector<8x32xi1>
    %166 = arith.select %165, %161, %139 : vector<8x32xi1>, vector<8x32xf32>
    %c0_60 = arith.constant 0 : index
    %c0_61 = arith.constant 0 : index
    %167 = vector.load %arg10[%c0_60, %c0_61] : memref<8x32xf32, #tpu.memory_space<vmem>>, vector<8x32xf32>
    tpu.vector_store %arg10[%c0_60, %c0_61], %166 {strides = array<i32>} : memref<8x32xf32, #tpu.memory_space<vmem>>, vector<8x32xf32>,
    %168 = vector.shape_cast %163 : vector<8x1xi1> to vector<8x1xi1>
    %169 = vector.broadcast %168 : vector<8x1xi1> to vector<8x32xi1>
    %170 = arith.select %169, %159, %140 : vector<8x32xi1>, vector<8x32xf32>
    %c0_62 = arith.constant 0 : index
    %c0_63 = arith.constant 0 : index
    %171 = vector.load %arg11[%c0_62, %c0_63] : memref<8x32xf32, #tpu.memory_space<vmem>>, vector<8x32xf32>
    tpu.vector_store %arg11[%c0_62, %c0_63], %170 {strides = array<i32>} : memref<8x32xf32, #tpu.memory_space<vmem>>, vector<8x32xf32>,
    %cst_64 = arith.constant 0.000000e+00 : f32
    %172 = vector.shape_cast %163 : vector<8x1xi1> to vector<8x1xi1>
    %173 = vector.broadcast %172 : vector<8x1xi1> to vector<8x32xi1>
    %174 = vector.broadcast %cst_64 : f32 to vector<8x32xf32>
    %175 = arith.select %173, %161, %174 : vector<8x32xi1>, vector<8x32xf32>
    %176 = arith.truncf %175 : vector<8x32xf32> to vector<8x32xbf16>
    %177 = arith.index_cast %c3_i32 : i32 to index
    %c0_65 = arith.constant 0 : index
    %c0_66 = arith.constant 0 : index
    %178 = vector.load %arg7[%177, %c0_65, %c0_66] : memref<8x8x32xbf16, #tpu.memory_space<vmem>>, vector<1x8x32xbf16>
    %179 = vector.shape_cast %178 : vector<1x8x32xbf16> to vector<8x32xbf16>
    %180 = vector.shape_cast %176 : vector<8x32xbf16> to vector<1x8x32xbf16>
    tpu.vector_store %arg7[%177, %c0_65, %c0_66], %180 {strides = array<i32>} : memref<8x8x32xbf16, #tpu.memory_space<vmem>>, vector<1x8x32xbf16>,
    %c4_i32 = arith.constant 4 : i32
    %c8_i32_67 = arith.constant 8 : i32
    %181 = arith.muli %arg1, %c8_i32_67 : i32
    %182 = arith.addi %181, %c4_i32 : i32
    %c0_68 = arith.constant 0 : index
    %c0_69 = arith.constant 0 : index
    %183 = vector.load %arg10[%c0_68, %c0_69] : memref<8x32xf32, #tpu.memory_space<vmem>>, vector<8x32xf32>
    %c0_70 = arith.constant 0 : index
    %c0_71 = arith.constant 0 : index
    %184 = vector.load %arg11[%c0_70, %c0_71] : memref<8x32xf32, #tpu.memory_space<vmem>>, vector<8x32xf32>
    %185 = arith.index_cast %c4_i32 : i32 to index
    %c0_72 = arith.constant 0 : index
    %c0_73 = arith.constant 0 : index
    %186 = vector.load %arg2[%185, %c0_72, %c0_73] : memref<8x8x128xbf16, #tpu.memory_space<vmem>>, vector<1x8x128xbf16>
    %187 = vector.shape_cast %186 : vector<1x8x128xbf16> to vector<8x128xbf16>
    %188 = arith.extf %187 : vector<8x128xbf16> to vector<8x128xf32>
    %cst_74 = arith.constant dense<0.000000e+00> : vector<8x128xf32>
    %189 = tpu.matmul %183, %4, %cst_74 {dimension_numbers = #tpu.dot_dimension_numbers<[1], [0], [0], [1], [0, 0, 1, 1], [], []>} : vector<8x32xf32>, vector<32x128xf32>, vector<8x128xf32> -> vector<8x128xf32>
    %190 = arith.addf %188, %189 : vector<8x128xf32>
    %191 = arith.negf %190 : vector<8x128xf32>
    %192 = math.exp %191 : vector<8x128xf32>
    %cst_75 = arith.constant 1.000000e+00 : f32
    %193 = vector.broadcast %cst_75 : f32 to vector<8x128xf32>
    %194 = arith.addf %193, %192 : vector<8x128xf32>
    %195 = arith.divf %193, %194 : vector<8x128xf32>
    %196 = math.tanh %190 : vector<8x128xf32>
    %197 = vector.extract_strided_slice %195 {offsets = [0, 0], sizes = [8, 32], strides = [1, 1]} : vector<8x128xf32> to vector<8x32xf32>
    %198 = vector.extract_strided_slice %195 {offsets = [0, 32], sizes = [8, 32], strides = [1, 1]} : vector<8x128xf32> to vector<8x32xf32>
    %199 = vector.extract_strided_slice %196 {offsets = [0, 64], sizes = [8, 32], strides = [1, 1]} : vector<8x128xf32> to vector<8x32xf32>
    %200 = vector.extract_strided_slice %195 {offsets = [0, 96], sizes = [8, 32], strides = [1, 1]} : vector<8x128xf32> to vector<8x32xf32>
    %201 = arith.mulf %198, %184 : vector<8x32xf32>
    %202 = arith.mulf %197, %199 : vector<8x32xf32>
    %203 = arith.addf %201, %202 : vector<8x32xf32>
    %204 = math.tanh %203 : vector<8x32xf32>
    %205 = arith.mulf %200, %204 : vector<8x32xf32>
    %206 = vector.broadcast %182 : i32 to vector<8x1xi32>
    %207 = arith.cmpi slt, %206, %3 : vector<8x1xi32>
    %208 = vector.shape_cast %207 : vector<8x1xi1> to vector<8x1xi1>
    %209 = vector.broadcast %208 : vector<8x1xi1> to vector<8x32xi1>
    %210 = arith.select %209, %205, %183 : vector<8x32xi1>, vector<8x32xf32>
    %c0_76 = arith.constant 0 : index
    %c0_77 = arith.constant 0 : index
    %211 = vector.load %arg10[%c0_76, %c0_77] : memref<8x32xf32, #tpu.memory_space<vmem>>, vector<8x32xf32>
    tpu.vector_store %arg10[%c0_76, %c0_77], %210 {strides = array<i32>} : memref<8x32xf32, #tpu.memory_space<vmem>>, vector<8x32xf32>,
    %212 = vector.shape_cast %207 : vector<8x1xi1> to vector<8x1xi1>
    %213 = vector.broadcast %212 : vector<8x1xi1> to vector<8x32xi1>
    %214 = arith.select %213, %203, %184 : vector<8x32xi1>, vector<8x32xf32>
    %c0_78 = arith.constant 0 : index
    %c0_79 = arith.constant 0 : index
    %215 = vector.load %arg11[%c0_78, %c0_79] : memref<8x32xf32, #tpu.memory_space<vmem>>, vector<8x32xf32>
    tpu.vector_store %arg11[%c0_78, %c0_79], %214 {strides = array<i32>} : memref<8x32xf32, #tpu.memory_space<vmem>>, vector<8x32xf32>,
    %cst_80 = arith.constant 0.000000e+00 : f32
    %216 = vector.shape_cast %207 : vector<8x1xi1> to vector<8x1xi1>
    %217 = vector.broadcast %216 : vector<8x1xi1> to vector<8x32xi1>
    %218 = vector.broadcast %cst_80 : f32 to vector<8x32xf32>
    %219 = arith.select %217, %205, %218 : vector<8x32xi1>, vector<8x32xf32>
    %220 = arith.truncf %219 : vector<8x32xf32> to vector<8x32xbf16>
    %221 = arith.index_cast %c4_i32 : i32 to index
    %c0_81 = arith.constant 0 : index
    %c0_82 = arith.constant 0 : index
    %222 = vector.load %arg7[%221, %c0_81, %c0_82] : memref<8x8x32xbf16, #tpu.memory_space<vmem>>, vector<1x8x32xbf16>
    %223 = vector.shape_cast %222 : vector<1x8x32xbf16> to vector<8x32xbf16>
    %224 = vector.shape_cast %220 : vector<8x32xbf16> to vector<1x8x32xbf16>
    tpu.vector_store %arg7[%221, %c0_81, %c0_82], %224 {strides = array<i32>} : memref<8x8x32xbf16, #tpu.memory_space<vmem>>, vector<1x8x32xbf16>,
    %c5_i32 = arith.constant 5 : i32
    %c8_i32_83 = arith.constant 8 : i32
    %225 = arith.muli %arg1, %c8_i32_83 : i32
    %226 = arith.addi %225, %c5_i32 : i32
    %c0_84 = arith.constant 0 : index
    %c0_85 = arith.constant 0 : index
    %227 = vector.load %arg10[%c0_84, %c0_85] : memref<8x32xf32, #tpu.memory_space<vmem>>, vector<8x32xf32>
    %c0_86 = arith.constant 0 : index
    %c0_87 = arith.constant 0 : index
    %228 = vector.load %arg11[%c0_86, %c0_87] : memref<8x32xf32, #tpu.memory_space<vmem>>, vector<8x32xf32>
    %229 = arith.index_cast %c5_i32 : i32 to index
    %c0_88 = arith.constant 0 : index
    %c0_89 = arith.constant 0 : index
    %230 = vector.load %arg2[%229, %c0_88, %c0_89] : memref<8x8x128xbf16, #tpu.memory_space<vmem>>, vector<1x8x128xbf16>
    %231 = vector.shape_cast %230 : vector<1x8x128xbf16> to vector<8x128xbf16>
    %232 = arith.extf %231 : vector<8x128xbf16> to vector<8x128xf32>
    %cst_90 = arith.constant dense<0.000000e+00> : vector<8x128xf32>
    %233 = tpu.matmul %227, %4, %cst_90 {dimension_numbers = #tpu.dot_dimension_numbers<[1], [0], [0], [1], [0, 0, 1, 1], [], []>} : vector<8x32xf32>, vector<32x128xf32>, vector<8x128xf32> -> vector<8x128xf32>
    %234 = arith.addf %232, %233 : vector<8x128xf32>
    %235 = arith.negf %234 : vector<8x128xf32>
    %236 = math.exp %235 : vector<8x128xf32>
    %cst_91 = arith.constant 1.000000e+00 : f32
    %237 = vector.broadcast %cst_91 : f32 to vector<8x128xf32>
    %238 = arith.addf %237, %236 : vector<8x128xf32>
    %239 = arith.divf %237, %238 : vector<8x128xf32>
    %240 = math.tanh %234 : vector<8x128xf32>
    %241 = vector.extract_strided_slice %239 {offsets = [0, 0], sizes = [8, 32], strides = [1, 1]} : vector<8x128xf32> to vector<8x32xf32>
    %242 = vector.extract_strided_slice %239 {offsets = [0, 32], sizes = [8, 32], strides = [1, 1]} : vector<8x128xf32> to vector<8x32xf32>
    %243 = vector.extract_strided_slice %240 {offsets = [0, 64], sizes = [8, 32], strides = [1, 1]} : vector<8x128xf32> to vector<8x32xf32>
    %244 = vector.extract_strided_slice %239 {offsets = [0, 96], sizes = [8, 32], strides = [1, 1]} : vector<8x128xf32> to vector<8x32xf32>
    %245 = arith.mulf %242, %228 : vector<8x32xf32>
    %246 = arith.mulf %241, %243 : vector<8x32xf32>
    %247 = arith.addf %245, %246 : vector<8x32xf32>
    %248 = math.tanh %247 : vector<8x32xf32>
    %249 = arith.mulf %244, %248 : vector<8x32xf32>
    %250 = vector.broadcast %226 : i32 to vector<8x1xi32>
    %251 = arith.cmpi slt, %250, %3 : vector<8x1xi32>
    %252 = vector.shape_cast %251 : vector<8x1xi1> to vector<8x1xi1>
    %253 = vector.broadcast %252 : vector<8x1xi1> to vector<8x32xi1>
    %254 = arith.select %253, %249, %227 : vector<8x32xi1>, vector<8x32xf32>
    %c0_92 = arith.constant 0 : index
    %c0_93 = arith.constant 0 : index
    %255 = vector.load %arg10[%c0_92, %c0_93] : memref<8x32xf32, #tpu.memory_space<vmem>>, vector<8x32xf32>
    tpu.vector_store %arg10[%c0_92, %c0_93], %254 {strides = array<i32>} : memref<8x32xf32, #tpu.memory_space<vmem>>, vector<8x32xf32>,
    %256 = vector.shape_cast %251 : vector<8x1xi1> to vector<8x1xi1>
    %257 = vector.broadcast %256 : vector<8x1xi1> to vector<8x32xi1>
    %258 = arith.select %257, %247, %228 : vector<8x32xi1>, vector<8x32xf32>
    %c0_94 = arith.constant 0 : index
    %c0_95 = arith.constant 0 : index
    %259 = vector.load %arg11[%c0_94, %c0_95] : memref<8x32xf32, #tpu.memory_space<vmem>>, vector<8x32xf32>
    tpu.vector_store %arg11[%c0_94, %c0_95], %258 {strides = array<i32>} : memref<8x32xf32, #tpu.memory_space<vmem>>, vector<8x32xf32>,
    %cst_96 = arith.constant 0.000000e+00 : f32
    %260 = vector.shape_cast %251 : vector<8x1xi1> to vector<8x1xi1>
    %261 = vector.broadcast %260 : vector<8x1xi1> to vector<8x32xi1>
    %262 = vector.broadcast %cst_96 : f32 to vector<8x32xf32>
    %263 = arith.select %261, %249, %262 : vector<8x32xi1>, vector<8x32xf32>
    %264 = arith.truncf %263 : vector<8x32xf32> to vector<8x32xbf16>
    %265 = arith.index_cast %c5_i32 : i32 to index
    %c0_97 = arith.constant 0 : index
    %c0_98 = arith.constant 0 : index
    %266 = vector.load %arg7[%265, %c0_97, %c0_98] : memref<8x8x32xbf16, #tpu.memory_space<vmem>>, vector<1x8x32xbf16>
    %267 = vector.shape_cast %266 : vector<1x8x32xbf16> to vector<8x32xbf16>
    %268 = vector.shape_cast %264 : vector<8x32xbf16> to vector<1x8x32xbf16>
    tpu.vector_store %arg7[%265, %c0_97, %c0_98], %268 {strides = array<i32>} : memref<8x8x32xbf16, #tpu.memory_space<vmem>>, vector<1x8x32xbf16>,
    %c6_i32 = arith.constant 6 : i32
    %c8_i32_99 = arith.constant 8 : i32
    %269 = arith.muli %arg1, %c8_i32_99 : i32
    %270 = arith.addi %269, %c6_i32 : i32
    %c0_100 = arith.constant 0 : index
    %c0_101 = arith.constant 0 : index
    %271 = vector.load %arg10[%c0_100, %c0_101] : memref<8x32xf32, #tpu.memory_space<vmem>>, vector<8x32xf32>
    %c0_102 = arith.constant 0 : index
    %c0_103 = arith.constant 0 : index
    %272 = vector.load %arg11[%c0_102, %c0_103] : memref<8x32xf32, #tpu.memory_space<vmem>>, vector<8x32xf32>
    %273 = arith.index_cast %c6_i32 : i32 to index
    %c0_104 = arith.constant 0 : index
    %c0_105 = arith.constant 0 : index
    %274 = vector.load %arg2[%273, %c0_104, %c0_105] : memref<8x8x128xbf16, #tpu.memory_space<vmem>>, vector<1x8x128xbf16>
    %275 = vector.shape_cast %274 : vector<1x8x128xbf16> to vector<8x128xbf16>
    %276 = arith.extf %275 : vector<8x128xbf16> to vector<8x128xf32>
    %cst_106 = arith.constant dense<0.000000e+00> : vector<8x128xf32>
    %277 = tpu.matmul %271, %4, %cst_106 {dimension_numbers = #tpu.dot_dimension_numbers<[1], [0], [0], [1], [0, 0, 1, 1], [], []>} : vector<8x32xf32>, vector<32x128xf32>, vector<8x128xf32> -> vector<8x128xf32>
    %278 = arith.addf %276, %277 : vector<8x128xf32>
    %279 = arith.negf %278 : vector<8x128xf32>
    %280 = math.exp %279 : vector<8x128xf32>
    %cst_107 = arith.constant 1.000000e+00 : f32
    %281 = vector.broadcast %cst_107 : f32 to vector<8x128xf32>
    %282 = arith.addf %281, %280 : vector<8x128xf32>
    %283 = arith.divf %281, %282 : vector<8x128xf32>
    %284 = math.tanh %278 : vector<8x128xf32>
    %285 = vector.extract_strided_slice %283 {offsets = [0, 0], sizes = [8, 32], strides = [1, 1]} : vector<8x128xf32> to vector<8x32xf32>
    %286 = vector.extract_strided_slice %283 {offsets = [0, 32], sizes = [8, 32], strides = [1, 1]} : vector<8x128xf32> to vector<8x32xf32>
    %287 = vector.extract_strided_slice %284 {offsets = [0, 64], sizes = [8, 32], strides = [1, 1]} : vector<8x128xf32> to vector<8x32xf32>
    %288 = vector.extract_strided_slice %283 {offsets = [0, 96], sizes = [8, 32], strides = [1, 1]} : vector<8x128xf32> to vector<8x32xf32>
    %289 = arith.mulf %286, %272 : vector<8x32xf32>
    %290 = arith.mulf %285, %287 : vector<8x32xf32>
    %291 = arith.addf %289, %290 : vector<8x32xf32>
    %292 = math.tanh %291 : vector<8x32xf32>
    %293 = arith.mulf %288, %292 : vector<8x32xf32>
    %294 = vector.broadcast %270 : i32 to vector<8x1xi32>
    %295 = arith.cmpi slt, %294, %3 : vector<8x1xi32>
    %296 = vector.shape_cast %295 : vector<8x1xi1> to vector<8x1xi1>
    %297 = vector.broadcast %296 : vector<8x1xi1> to vector<8x32xi1>
    %298 = arith.select %297, %293, %271 : vector<8x32xi1>, vector<8x32xf32>
    %c0_108 = arith.constant 0 : index
    %c0_109 = arith.constant 0 : index
    %299 = vector.load %arg10[%c0_108, %c0_109] : memref<8x32xf32, #tpu.memory_space<vmem>>, vector<8x32xf32>
    tpu.vector_store %arg10[%c0_108, %c0_109], %298 {strides = array<i32>} : memref<8x32xf32, #tpu.memory_space<vmem>>, vector<8x32xf32>,
    %300 = vector.shape_cast %295 : vector<8x1xi1> to vector<8x1xi1>
    %301 = vector.broadcast %300 : vector<8x1xi1> to vector<8x32xi1>
    %302 = arith.select %301, %291, %272 : vector<8x32xi1>, vector<8x32xf32>
    %c0_110 = arith.constant 0 : index
    %c0_111 = arith.constant 0 : index
    %303 = vector.load %arg11[%c0_110, %c0_111] : memref<8x32xf32, #tpu.memory_space<vmem>>, vector<8x32xf32>
    tpu.vector_store %arg11[%c0_110, %c0_111], %302 {strides = array<i32>} : memref<8x32xf32, #tpu.memory_space<vmem>>, vector<8x32xf32>,
    %cst_112 = arith.constant 0.000000e+00 : f32
    %304 = vector.shape_cast %295 : vector<8x1xi1> to vector<8x1xi1>
    %305 = vector.broadcast %304 : vector<8x1xi1> to vector<8x32xi1>
    %306 = vector.broadcast %cst_112 : f32 to vector<8x32xf32>
    %307 = arith.select %305, %293, %306 : vector<8x32xi1>, vector<8x32xf32>
    %308 = arith.truncf %307 : vector<8x32xf32> to vector<8x32xbf16>
    %309 = arith.index_cast %c6_i32 : i32 to index
    %c0_113 = arith.constant 0 : index
    %c0_114 = arith.constant 0 : index
    %310 = vector.load %arg7[%309, %c0_113, %c0_114] : memref<8x8x32xbf16, #tpu.memory_space<vmem>>, vector<1x8x32xbf16>
    %311 = vector.shape_cast %310 : vector<1x8x32xbf16> to vector<8x32xbf16>
    %312 = vector.shape_cast %308 : vector<8x32xbf16> to vector<1x8x32xbf16>
    tpu.vector_store %arg7[%309, %c0_113, %c0_114], %312 {strides = array<i32>} : memref<8x8x32xbf16, #tpu.memory_space<vmem>>, vector<1x8x32xbf16>,
    %c7_i32 = arith.constant 7 : i32
    %c8_i32_115 = arith.constant 8 : i32
    %313 = arith.muli %arg1, %c8_i32_115 : i32
    %314 = arith.addi %313, %c7_i32 : i32
    %c0_116 = arith.constant 0 : index
    %c0_117 = arith.constant 0 : index
    %315 = vector.load %arg10[%c0_116, %c0_117] : memref<8x32xf32, #tpu.memory_space<vmem>>, vector<8x32xf32>
    %c0_118 = arith.constant 0 : index
    %c0_119 = arith.constant 0 : index
    %316 = vector.load %arg11[%c0_118, %c0_119] : memref<8x32xf32, #tpu.memory_space<vmem>>, vector<8x32xf32>
    %317 = arith.index_cast %c7_i32 : i32 to index
    %c0_120 = arith.constant 0 : index
    %c0_121 = arith.constant 0 : index
    %318 = vector.load %arg2[%317, %c0_120, %c0_121] : memref<8x8x128xbf16, #tpu.memory_space<vmem>>, vector<1x8x128xbf16>
    %319 = vector.shape_cast %318 : vector<1x8x128xbf16> to vector<8x128xbf16>
    %320 = arith.extf %319 : vector<8x128xbf16> to vector<8x128xf32>
    %cst_122 = arith.constant dense<0.000000e+00> : vector<8x128xf32>
    %321 = tpu.matmul %315, %4, %cst_122 {dimension_numbers = #tpu.dot_dimension_numbers<[1], [0], [0], [1], [0, 0, 1, 1], [], []>} : vector<8x32xf32>, vector<32x128xf32>, vector<8x128xf32> -> vector<8x128xf32>
    %322 = arith.addf %320, %321 : vector<8x128xf32>
    %323 = arith.negf %322 : vector<8x128xf32>
    %324 = math.exp %323 : vector<8x128xf32>
    %cst_123 = arith.constant 1.000000e+00 : f32
    %325 = vector.broadcast %cst_123 : f32 to vector<8x128xf32>
    %326 = arith.addf %325, %324 : vector<8x128xf32>
    %327 = arith.divf %325, %326 : vector<8x128xf32>
    %328 = math.tanh %322 : vector<8x128xf32>
    %329 = vector.extract_strided_slice %327 {offsets = [0, 0], sizes = [8, 32], strides = [1, 1]} : vector<8x128xf32> to vector<8x32xf32>
    %330 = vector.extract_strided_slice %327 {offsets = [0, 32], sizes = [8, 32], strides = [1, 1]} : vector<8x128xf32> to vector<8x32xf32>
    %331 = vector.extract_strided_slice %328 {offsets = [0, 64], sizes = [8, 32], strides = [1, 1]} : vector<8x128xf32> to vector<8x32xf32>
    %332 = vector.extract_strided_slice %327 {offsets = [0, 96], sizes = [8, 32], strides = [1, 1]} : vector<8x128xf32> to vector<8x32xf32>
    %333 = arith.mulf %330, %316 : vector<8x32xf32>
    %334 = arith.mulf %329, %331 : vector<8x32xf32>
    %335 = arith.addf %333, %334 : vector<8x32xf32>
    %336 = math.tanh %335 : vector<8x32xf32>
    %337 = arith.mulf %332, %336 : vector<8x32xf32>
    %338 = vector.broadcast %314 : i32 to vector<8x1xi32>
    %339 = arith.cmpi slt, %338, %3 : vector<8x1xi32>
    %340 = vector.shape_cast %339 : vector<8x1xi1> to vector<8x1xi1>
    %341 = vector.broadcast %340 : vector<8x1xi1> to vector<8x32xi1>
    %342 = arith.select %341, %337, %315 : vector<8x32xi1>, vector<8x32xf32>
    %c0_124 = arith.constant 0 : index
    %c0_125 = arith.constant 0 : index
    %343 = vector.load %arg10[%c0_124, %c0_125] : memref<8x32xf32, #tpu.memory_space<vmem>>, vector<8x32xf32>
    tpu.vector_store %arg10[%c0_124, %c0_125], %342 {strides = array<i32>} : memref<8x32xf32, #tpu.memory_space<vmem>>, vector<8x32xf32>,
    %344 = vector.shape_cast %339 : vector<8x1xi1> to vector<8x1xi1>
    %345 = vector.broadcast %344 : vector<8x1xi1> to vector<8x32xi1>
    %346 = arith.select %345, %335, %316 : vector<8x32xi1>, vector<8x32xf32>
    %c0_126 = arith.constant 0 : index
    %c0_127 = arith.constant 0 : index
    %347 = vector.load %arg11[%c0_126, %c0_127] : memref<8x32xf32, #tpu.memory_space<vmem>>, vector<8x32xf32>
    tpu.vector_store %arg11[%c0_126, %c0_127], %346 {strides = array<i32>} : memref<8x32xf32, #tpu.memory_space<vmem>>, vector<8x32xf32>,
    %cst_128 = arith.constant 0.000000e+00 : f32
    %348 = vector.shape_cast %339 : vector<8x1xi1> to vector<8x1xi1>
    %349 = vector.broadcast %348 : vector<8x1xi1> to vector<8x32xi1>
    %350 = vector.broadcast %cst_128 : f32 to vector<8x32xf32>
    %351 = arith.select %349, %337, %350 : vector<8x32xi1>, vector<8x32xf32>
    %352 = arith.truncf %351 : vector<8x32xf32> to vector<8x32xbf16>
    %353 = arith.index_cast %c7_i32 : i32 to index
    %c0_129 = arith.constant 0 : index
    %c0_130 = arith.constant 0 : index
    %354 = vector.load %arg7[%353, %c0_129, %c0_130] : memref<8x8x32xbf16, #tpu.memory_space<vmem>>, vector<1x8x32xbf16>
    %355 = vector.shape_cast %354 : vector<1x8x32xbf16> to vector<8x32xbf16>
    %356 = vector.shape_cast %352 : vector<8x32xbf16> to vector<1x8x32xbf16>
    tpu.vector_store %arg7[%353, %c0_129, %c0_130], %356 {strides = array<i32>} : memref<8x8x32xbf16, #tpu.memory_space<vmem>>, vector<1x8x32xbf16>,
    %c8_i32_131 = arith.constant 8 : i32
    %c0_i32_132 = arith.constant 0 : i32
    %357 = arith.cmpi eq, %arg1, %c0_i32_132 : i32
    %358 = arith.extui %357 : i1 to i32
    %c0_i32_133 = arith.constant 0 : i32
    %359 = arith.cmpi ne, %358, %c0_i32_133 : i32
    scf.if %359 {
      %c0_134 = arith.constant 0 : index
      %c0_135 = arith.constant 0 : index
      %360 = vector.load %arg10[%c0_134, %c0_135] : memref<8x32xf32, #tpu.memory_space<vmem>>, vector<8x32xf32>
      %c0_136 = arith.constant 0 : index
      %c0_137 = arith.constant 0 : index
      %361 = vector.load %arg8[%c0_136, %c0_137] : memref<8x32xf32, #tpu.memory_space<vmem>>, vector<8x32xf32>
      tpu.vector_store %arg8[%c0_136, %c0_137], %360 {strides = array<i32>} : memref<8x32xf32, #tpu.memory_space<vmem>>, vector<8x32xf32>,
      %c0_138 = arith.constant 0 : index
      %c0_139 = arith.constant 0 : index
      %362 = vector.load %arg11[%c0_138, %c0_139] : memref<8x32xf32, #tpu.memory_space<vmem>>, vector<8x32xf32>
      %c0_140 = arith.constant 0 : index
      %c0_141 = arith.constant 0 : index
      %363 = vector.load %arg9[%c0_140, %c0_141] : memref<8x32xf32, #tpu.memory_space<vmem>>, vector<8x32xf32>
      tpu.vector_store %arg9[%c0_140, %c0_141], %362 {strides = array<i32>} : memref<8x32xf32, #tpu.memory_space<vmem>>, vector<8x32xf32>,
    } else {
    }
    return
  }
  func.func @transform_0(%arg0: i32, %arg1: i32) -> (i32, i32, i32) {
    %c0_i32 = arith.constant 0 : i32
    %c0_i32_0 = arith.constant 0 : i32
    return %arg1, %arg0, %c0_i32 : i32, i32, i32
  }
  func.func @transform_1(%arg0: i32, %arg1: i32) -> (i32, i32) {
    %c0_i32 = arith.constant 0 : i32
    %c0_i32_0 = arith.constant 0 : i32
    return %arg0, %c0_i32 : i32, i32
  }
  func.func @transform_2(%arg0: i32, %arg1: i32) -> (i32, i32) {
    %c0_i32 = arith.constant 0 : i32
    %c0_i32_0 = arith.constant 0 : i32
    %c0_i32_1 = arith.constant 0 : i32
    return %c0_i32, %c0_i32_0 : i32, i32
  }
  func.func @transform_3(%arg0: i32, %arg1: i32) -> (i32, i32) {
    %c0_i32 = arith.constant 0 : i32
    %c0_i32_0 = arith.constant 0 : i32
    return %arg0, %c0_i32 : i32, i32
  }
  func.func @transform_4(%arg0: i32, %arg1: i32) -> (i32, i32) {
    %c0_i32 = arith.constant 0 : i32
    %c0_i32_0 = arith.constant 0 : i32
    return %arg0, %c0_i32 : i32, i32
  }
  func.func @transform_5(%arg0: i32, %arg1: i32) -> (i32, i32, i32) {
    %c0_i32 = arith.constant 0 : i32
    %c0_i32_0 = arith.constant 0 : i32
    return %arg1, %arg0, %c0_i32 : i32, i32, i32
  }
  func.func @transform_6(%arg0: i32, %arg1: i32) -> (i32, i32) {
    %c0_i32 = arith.constant 0 : i32
    %c0_i32_0 = arith.constant 0 : i32
    return %arg0, %c0_i32 : i32, i32
  }
  func.func @transform_7(%arg0: i32, %arg1: i32) -> (i32, i32) {
    %c0_i32 = arith.constant 0 : i32
    %c0_i32_0 = arith.constant 0 : i32
    return %arg0, %c0_i32 : i32, i32
  }
}

module attributes {stable_mosaic.version = 11 : i64} {
  func.func @_linear_kernel(%arg0: i32, %arg1: memref<16x32xbf16, #tpu.memory_space<vmem>>, %arg2: memref<32x128xbf16, #tpu.memory_space<vmem>>, %arg3: memref<1x128xf32, #tpu.memory_space<vmem>>, %arg4: memref<16x128xf32, #tpu.memory_space<vmem>>) attributes {dimension_semantics = [#tpu.dimension_semantics<parallel>], iteration_bounds = array<i64: 1>, scalar_prefetch = 0 : i64, scratch_operands = 0 : i64, tpu.core_type = #tpu.core_type<tc>, window_params = [{transform_indices = @transform_0, window_bounds = array<i64: 16, 32>}, {pipeline_mode = #tpu.pipeline_mode<synchronous>, transform_indices = @transform_1, window_bounds = array<i64: 32, 128>}, {pipeline_mode = #tpu.pipeline_mode<synchronous>, transform_indices = @transform_2, window_bounds = array<i64: 1, 128>}, {transform_indices = @transform_3, window_bounds = array<i64: 16, 128>}]} {
    %c0 = arith.constant 0 : index
    %c0_0 = arith.constant 0 : index
    %0 = vector.load %arg1[%c0, %c0_0] : memref<16x32xbf16, #tpu.memory_space<vmem>>, vector<16x32xbf16>
    %c0_1 = arith.constant 0 : index
    %c0_2 = arith.constant 0 : index
    %1 = vector.load %arg2[%c0_1, %c0_2] : memref<32x128xbf16, #tpu.memory_space<vmem>>, vector<32x128xbf16>
    %cst = arith.constant dense<0.000000e+00> : vector<16x128xf32>
    %2 = tpu.matmul %0, %1, %cst {dimension_numbers = #tpu.dot_dimension_numbers<[1], [0], [0], [1], [0, 0, 1, 1], [], []>} : vector<16x32xbf16>, vector<32x128xbf16>, vector<16x128xf32> -> vector<16x128xf32>
    %c0_3 = arith.constant 0 : index
    %c0_4 = arith.constant 0 : index
    %3 = vector.load %arg3[%c0_3, %c0_4] : memref<1x128xf32, #tpu.memory_space<vmem>>, vector<1x128xf32>
    %4 = vector.broadcast %3 : vector<1x128xf32> to vector<16x128xf32>
    %5 = arith.addf %2, %4 : vector<16x128xf32>
    %c0_5 = arith.constant 0 : index
    %c0_6 = arith.constant 0 : index
    %6 = vector.load %arg4[%c0_5, %c0_6] : memref<16x128xf32, #tpu.memory_space<vmem>>, vector<16x128xf32>
    tpu.vector_store %arg4[%c0_5, %c0_6], %5 {strides = array<i32>} : memref<16x128xf32, #tpu.memory_space<vmem>>, vector<16x128xf32>,
    return
  }
  func.func @transform_0(%arg0: i32) -> (i32, i32) {
    %c0_i32 = arith.constant 0 : i32
    %c0_i32_0 = arith.constant 0 : i32
    return %arg0, %c0_i32 : i32, i32
  }
  func.func @transform_1(%arg0: i32) -> (i32, i32) {
    %c0_i32 = arith.constant 0 : i32
    %c0_i32_0 = arith.constant 0 : i32
    %c0_i32_1 = arith.constant 0 : i32
    return %c0_i32, %c0_i32_0 : i32, i32
  }
  func.func @transform_2(%arg0: i32) -> (i32, i32) {
    %c0_i32 = arith.constant 0 : i32
    %c0_i32_0 = arith.constant 0 : i32
    %c0_i32_1 = arith.constant 0 : i32
    return %c0_i32, %c0_i32_0 : i32, i32
  }
  func.func @transform_3(%arg0: i32) -> (i32, i32) {
    %c0_i32 = arith.constant 0 : i32
    %c0_i32_0 = arith.constant 0 : i32
    return %arg0, %c0_i32 : i32, i32
  }
}

</mosaic_0001>

<llo_original>
// kernel: _forward_core.3
$region0: #{_forward_core.3}
  #allocation0 [shape = 'u32[]', space=smem, size = 0x4, offset = 0x4, fixed_abs, tag = 'smem constant byte address 0x4 - core index']
  #allocation1 [shape = 'u32[144,128]{1,0:T(1,128)}', space=vmem, size = 0x12000, scoped, tag = 'internal scratch']
  %s0 = inlined_call_operand.vmem [shape: f32[128,16], index: 0, kind: input, shape index: {}]
  %s1 = inlined_call_operand.vmem [shape: f32[16,128], index: 1, kind: input, shape index: {}]
  %s2 = inlined_call_operand.vmem [shape: f32[1,128], index: 2, kind: input, shape index: {}]
  %s3 = inlined_call_operand.vmem [shape: bf16[128,128], index: 3, kind: output, shape index: {}]
  %s4 = sld [smem:[#allocation0]]
  $region22: #{_forward_core.3} parent=0
    _
  %s6 = ssub.s32 1, %s4
  %s7 = scalar_select 0, %s6, %s4
  // Predicated region
  $region2: #{_forward_core.3} parent=0 // pred_check
    _
  $region3: #{_forward_core.3} parent=0 // pred_check_branch
    %9 = sbr.rel (0) target = $region5
  $region4: #{_forward_core.3} parent=0 // pred_region
    _
  $region5: #{_forward_core.3} parent=0 // pred_fallthru
    _
  // Predicated region
  $region6: #{_forward_core.3} parent=0 // pred_check
    _
  $region7: #{_forward_core.3} parent=0 // pred_check_branch
    %11 = sbr.rel (0) target = $region9
  $region8: #{_forward_core.3} parent=0 // pred_region
    _
  $region9: #{_forward_core.3} parent=0 // pred_fallthru
    _
  // Predicated region
  $region10: #{_forward_core.3} parent=0 // pred_check
    _
  $region11: #{_forward_core.3} parent=0 // pred_check_branch
    %13 = sbr.rel (0) target = $region13
  $region12: #{_forward_core.3} parent=0 // pred_region
    _
  $region13: #{_forward_core.3} parent=0 // pred_fallthru
    _
  %v14 = vld [vmem:[%s0] sm:$0xff]
  %v15 = vld [vmem:[%s0 + $0x8] sm:$0xff]
  %v16 = vld [vmem:[%s0 + $0x10] sm:$0xff]
  %v17 = vld [vmem:[%s0 + $0x18] sm:$0xff]
  %v18 = vld [vmem:[%s0 + $0x20] sm:$0xff]
  %v19 = vld [vmem:[%s0 + $0x28] sm:$0xff]
  %v20 = vld [vmem:[%s0 + $0x30] sm:$0xff]
  %v21 = vld [vmem:[%s0 + $0x38] sm:$0xff]
  %v22 = vld [vmem:[%s0 + $0x40] sm:$0xff]
  %v23 = vld [vmem:[%s0 + $0x48] sm:$0xff]
  %v24 = vld [vmem:[%s0 + $0x50] sm:$0xff]
  %v25 = vld [vmem:[%s0 + $0x58] sm:$0xff]
  %v26 = vld [vmem:[%s0 + $0x60] sm:$0xff]
  %v27 = vld [vmem:[%s0 + $0x68] sm:$0xff]
  %v28 = vld [vmem:[%s0 + $0x70] sm:$0xff]
  %v29 = vld [vmem:[%s0 + $0x78] sm:$0xff]
  %v30 = vld [vmem:[%s1] sm:$0xff]
  %v31 = vld [vmem:[%s1 + $0x8] sm:$0xff]
  %v32 = vld [vmem:[%s2] sm:$0x1]
  %v34 = vlaneseq
  %v35 = vshrl.u32 %v34, 7
  %v36 = vsub.s32 0, %v35
  %v37 = vrot.slane %v32, %v36
  %vm39 = vcmask 130048
  %v41 = vsel %vm39, %v14, 0
  %v44 = vsel %vm39, %v15, 0
  %v47 = vsel %vm39, %v16, 0
  %v50 = vsel %vm39, %v17, 0
  %v53 = vsel %vm39, %v18, 0
  %v56 = vsel %vm39, %v19, 0
  %v59 = vsel %vm39, %v20, 0
  %v62 = vsel %vm39, %v21, 0
  %v65 = vsel %vm39, %v22, 0
  %v68 = vsel %vm39, %v23, 0
  %v71 = vsel %vm39, %v24, 0
  %v74 = vsel %vm39, %v25, 0
  %v77 = vsel %vm39, %v26, 0
  %v80 = vsel %vm39, %v27, 0
  %v83 = vsel %vm39, %v28, 0
  %v86 = vsel %vm39, %v29, 0
  %88 = vmatprep.subr.mxu0 0.0
  %89 = vmatpush1.msra.mxu0 0.0
  %90 = vmatprep.subr.mxu0 0.0
  %91 = vmatpush1.msra.mxu0 0.0
  %92 = vmatprep.subr.mxu0 0.0
  %93 = vmatpush1.msra.mxu0 0.0
  %94 = vmatprep.subr.mxu0 0.0
  %95 = vmatpush1.msra.mxu0 0.0
  %96 = vmatprep.subr.mxu0 0.0
  %97 = vmatpush1.msra.mxu0 0.0
  %98 = vmatprep.subr.mxu0 0.0
  %99 = vmatpush1.msra.mxu0 0.0
  %100 = vmatprep.subr.mxu0 0.0
  %101 = vmatpush1.msra.mxu0 0.0
  %102 = vmatprep.subr.mxu0 0.0
  %103 = vmatpush1.msra.mxu0 0.0
  %104 = vmatprep.subr.mxu0 0.0
  %105 = vmatpush1.msra.mxu0 0.0
  %106 = vmatprep.subr.mxu0 0.0
  %107 = vmatpush1.msra.mxu0 0.0
  %108 = vmatprep.subr.mxu0 0.0
  %109 = vmatpush1.msra.mxu0 0.0
  %110 = vmatprep.subr.mxu0 0.0
  %111 = vmatpush1.msra.mxu0 0.0
  %112 = vmatprep.subr.mxu0 0.0
  %113 = vmatpush1.msra.mxu0 0.0
  %114 = vmatprep.subr.mxu0 0.0
  %115 = vmatpush1.msra.mxu0 0.0
  %116 = vmatprep.subr.mxu0 0.0
  %117 = vmatpush1.msra.mxu0 %v31
  %118 = vmatprep.subr.mxu0 0.0
  %119 = vmatpush1.msra.mxu0 %v30
  %120 = vmatprep.subr.mxu0 0.0
  %121 = vmatpush2.msra.mxu0 0.0
  %122 = vmatprep.subr.mxu0 0.0
  %123 = vmatpush2.msra.mxu0 0.0
  %124 = vmatprep.subr.mxu0 0.0
  %125 = vmatpush2.msra.mxu0 0.0
  %126 = vmatprep.subr.mxu0 0.0
  %127 = vmatpush2.msra.mxu0 0.0
  %128 = vmatprep.subr.mxu0 0.0
  %129 = vmatpush2.msra.mxu0 0.0
  %130 = vmatprep.subr.mxu0 0.0
  %131 = vmatpush2.msra.mxu0 0.0
  %132 = vmatprep.subr.mxu0 0.0
  %133 = vmatpush2.msra.mxu0 0.0
  %134 = vmatprep.subr.mxu0 0.0
  %135 = vmatpush2.msra.mxu0 0.0
  %136 = vmatprep.subr.mxu0 0.0
  %137 = vmatpush2.msra.mxu0 0.0
  %138 = vmatprep.subr.mxu0 0.0
  %139 = vmatpush2.msra.mxu0 0.0
  %140 = vmatprep.subr.mxu0 0.0
  %141 = vmatpush2.msra.mxu0 0.0
  %142 = vmatprep.subr.mxu0 0.0
  %143 = vmatpush2.msra.mxu0 0.0
  %144 = vmatprep.subr.mxu0 0.0
  %145 = vmatpush2.msra.mxu0 0.0
  %146 = vmatprep.subr.mxu0 0.0
  %147 = vmatpush2.msra.mxu0 0.0
  %148 = vmatprep.subr.mxu0 0.0
  %149 = vmatpush2.msra.mxu0 0.0
  %150 = vmatprep.subr.mxu0 0.0
  %151 = vmatpush2.msra.mxu0 0.0
  %152 = vmatprep.mubr.f32.mxu0 0.0
  %153 = vmatmul.mubr.f32.gmra.mxu0 %v41
  %v154 = vpop.f32.mrf.mxu0
  %v155 = vadd.f32 %v37, %v154
  %v156 = vpop.f32.mrf.mxu0
  %157 = vmatprep.mubr.f32.mxu0 0.0
  %158 = vmatmul.mubr.f32.gmra.mxu0 %v44
  %v159 = vpop.f32.mrf.mxu0
  %v160 = vadd.f32 %v37, %v159
  %v161 = vpop.f32.mrf.mxu0
  %162 = vmatprep.mubr.f32.mxu0 0.0
  %163 = vmatmul.mubr.f32.gmra.mxu0 %v47
  %v164 = vpop.f32.mrf.mxu0
  %v165 = vadd.f32 %v37, %v164
  %v166 = vpop.f32.mrf.mxu0
  %167 = vmatprep.mubr.f32.mxu0 0.0
  %168 = vmatmul.mubr.f32.gmra.mxu0 %v50
  %v169 = vpop.f32.mrf.mxu0
  %v170 = vadd.f32 %v37, %v169
  %v171 = vpop.f32.mrf.mxu0
  %172 = vmatprep.mubr.f32.mxu0 0.0
  %173 = vmatmul.mubr.f32.gmra.mxu0 %v53
  %v174 = vpop.f32.mrf.mxu0
  %v175 = vadd.f32 %v37, %v174
  %v176 = vpop.f32.mrf.mxu0
  %177 = vmatprep.mubr.f32.mxu0 0.0
  %178 = vmatmul.mubr.f32.gmra.mxu0 %v56
  %v179 = vpop.f32.mrf.mxu0
  %v180 = vadd.f32 %v37, %v179
  %v181 = vpop.f32.mrf.mxu0
  %182 = vmatprep.mubr.f32.mxu0 0.0
  %183 = vmatmul.mubr.f32.gmra.mxu0 %v59
  %v184 = vpop.f32.mrf.mxu0
  %v185 = vadd.f32 %v37, %v184
  %v186 = vpop.f32.mrf.mxu0
  %187 = vmatprep.mubr.f32.mxu0 0.0
  %188 = vmatmul.mubr.f32.gmra.mxu0 %v62
  %v189 = vpop.f32.mrf.mxu0
  %v190 = vadd.f32 %v37, %v189
  %v191 = vpop.f32.mrf.mxu0
  %192 = vmatprep.mubr.f32.mxu0 0.0
  %193 = vmatmul.mubr.f32.gmra.mxu0 %v65
  %v194 = vpop.f32.mrf.mxu0
  %v195 = vadd.f32 %v37, %v194
  %v196 = vpop.f32.mrf.mxu0
  %197 = vmatprep.mubr.f32.mxu0 0.0
  %198 = vmatmul.mubr.f32.gmra.mxu0 %v68
  %v199 = vpop.f32.mrf.mxu0
  %v200 = vadd.f32 %v37, %v199
  %v201 = vpop.f32.mrf.mxu0
  %202 = vmatprep.mubr.f32.mxu0 0.0
  %203 = vmatmul.mubr.f32.gmra.mxu0 %v71
  %v204 = vpop.f32.mrf.mxu0
  %v205 = vadd.f32 %v37, %v204
  %v206 = vpop.f32.mrf.mxu0
  %207 = vmatprep.mubr.f32.mxu0 0.0
  %208 = vmatmul.mubr.f32.gmra.mxu0 %v74
  %v209 = vpop.f32.mrf.mxu0
  %v210 = vadd.f32 %v37, %v209
  %v211 = vpop.f32.mrf.mxu0
  %212 = vmatprep.mubr.f32.mxu0 0.0
  %213 = vmatmul.mubr.f32.gmra.mxu0 %v77
  %v214 = vpop.f32.mrf.mxu0
  %v215 = vadd.f32 %v37, %v214
  %v216 = vpop.f32.mrf.mxu0
  %217 = vmatprep.mubr.f32.mxu0 0.0
  %218 = vmatmul.mubr.f32.gmra.mxu0 %v80
  %v219 = vpop.f32.mrf.mxu0
  %v220 = vadd.f32 %v37, %v219
  %v221 = vpop.f32.mrf.mxu0
  %222 = vmatprep.mubr.f32.mxu0 0.0
  %223 = vmatmul.mubr.f32.gmra.mxu0 %v83
  %v224 = vpop.f32.mrf.mxu0
  %v225 = vadd.f32 %v37, %v224
  %v226 = vpop.f32.mrf.mxu0
  %227 = vmatprep.mubr.f32.mxu0 0.0
  %228 = vmatmul.mubr.f32.gmra.mxu0 %v86
  %v229 = vpop.f32.mrf.mxu0
  %v230 = vadd.f32 %v37, %v229
  %v231 = vpop.f32.mrf.mxu0
  %232 = vdwg.mxu0
  %v233 = vpack.c.bf16 %v160, %v155
  %v234 = vpack.c.bf16 %v170, %v165
  %v235 = vpack.c.bf16 %v180, %v175
  %v236 = vpack.c.bf16 %v190, %v185
  %v237 = vpack.c.bf16 %v200, %v195
  %v238 = vpack.c.bf16 %v210, %v205
  %v239 = vpack.c.bf16 %v220, %v215
  %v240 = vpack.c.bf16 %v230, %v225
  %v249 = vunpack.c.l.b16 %v233
  %v250 = vunpack.c.h.b16 %v233
  %v251 = vunpack.c.l.b16 %v234
  %v252 = vunpack.c.h.b16 %v234
  %v253 = vunpack.c.l.b16 %v235
  %v254 = vunpack.c.h.b16 %v235
  %v255 = vunpack.c.l.b16 %v236
  %v256 = vunpack.c.h.b16 %v236
  %v257 = vunpack.c.l.b16 %v237
  %v258 = vunpack.c.h.b16 %v237
  %v259 = vunpack.c.l.b16 %v238
  %v260 = vunpack.c.h.b16 %v238
  %v261 = vunpack.c.l.b16 %v239
  %v262 = vunpack.c.h.b16 %v239
  %v263 = vunpack.c.l.b16 %v240
  %v264 = vunpack.c.h.b16 %v240
  %v265 = vpack.c.b16 %v249, %v249
  %v266 = vpack.c.b16 %v250, %v250
  %v267 = vpack.c.b16 %v251, %v251
  %v268 = vpack.c.b16 %v252, %v252
  %v269 = vpack.c.b16 %v253, %v253
  %v270 = vpack.c.b16 %v254, %v254
  %v271 = vpack.c.b16 %v255, %v255
  %v272 = vpack.c.b16 %v256, %v256
  %v273 = vpack.c.b16 %v257, %v257
  %v274 = vpack.c.b16 %v258, %v258
  %v275 = vpack.c.b16 %v259, %v259
  %v276 = vpack.c.b16 %v260, %v260
  %v277 = vpack.c.b16 %v261, %v261
  %v278 = vpack.c.b16 %v262, %v262
  %v279 = vpack.c.b16 %v263, %v263
  %v280 = vpack.c.b16 %v264, %v264
  %297 = vst [vmem:[%s3] sm:$0xf] %v265
  %298 = vst [vmem:[%s3 + $0x4] sm:$0xf] %v266
  %299 = vst [vmem:[%s3 + $0x8] sm:$0xf] %v267
  %300 = vst [vmem:[%s3 + $0xc] sm:$0xf] %v268
  %301 = vst [vmem:[%s3 + $0x10] sm:$0xf] %v269
  %302 = vst [vmem:[%s3 + $0x14] sm:$0xf] %v270
  %303 = vst [vmem:[%s3 + $0x18] sm:$0xf] %v271
  %304 = vst [vmem:[%s3 + $0x1c] sm:$0xf] %v272
  %305 = vst [vmem:[%s3 + $0x20] sm:$0xf] %v273
  %306 = vst [vmem:[%s3 + $0x24] sm:$0xf] %v274
  %307 = vst [vmem:[%s3 + $0x28] sm:$0xf] %v275
  %308 = vst [vmem:[%s3 + $0x2c] sm:$0xf] %v276
  %309 = vst [vmem:[%s3 + $0x30] sm:$0xf] %v277
  %310 = vst [vmem:[%s3 + $0x34] sm:$0xf] %v278
  %311 = vst [vmem:[%s3 + $0x38] sm:$0xf] %v279
  %312 = vst [vmem:[%s3 + $0x3c] sm:$0xf] %v280
  // Predicated region
  $region14: #{_forward_core.3} parent=0 // pred_check
    _
  $region15: #{_forward_core.3} parent=0 // pred_check_branch
    %314 = sbr.rel (0) target = $region17
  $region16: #{_forward_core.3} parent=0 // pred_region
    _
  $region17: #{_forward_core.3} parent=0 // pred_fallthru
    _
  // Predicated region
  $region18: #{_forward_core.3} parent=0 // pred_check
    _
  $region19: #{_forward_core.3} parent=0 // pred_check_branch
    %316 = sbr.rel (0) target = $region21
  $region20: #{_forward_core.3} parent=0 // pred_region
    _
  $region21: #{_forward_core.3} parent=0 // pred_fallthru
    _

// kernel: _forward_core.5
$region0: #{_forward_core.5}
  #allocation0 [shape = 'u32[]', space=smem, size = 0x4, offset = 0x4, fixed_abs, tag = 'smem constant byte address 0x4 - core index']
  #allocation1 [shape = 'u32[144,128]{1,0:T(1,128)}', space=vmem, size = 0x12000, scoped, tag = 'internal scratch']
  %s0 = inlined_call_operand.vmem [shape: bf16[16,32], index: 0, kind: input, shape index: {}]
  %s1 = inlined_call_operand.vmem [shape: bf16[32,128], index: 1, kind: input, shape index: {}]
  %s2 = inlined_call_operand.vmem [shape: f32[1,128], index: 2, kind: input, shape index: {}]
  %s3 = inlined_call_operand.hbm [shape: f32[16,128], index: 3, kind: output, shape index: {}]
  %s4 = sld [smem:[#allocation0]]
  $region22: #{_forward_core.5} parent=0
    _
  %s6 = ssub.s32 1, %s4
  %s7 = scalar_select 0, %s6, %s4
  $region1: #{_forward_core.5} parent=0
    #allocation2 [shape = 'u8[8192]{0}', space=vmem, size = 0x2000, scoped, tag = 'output window, operand 0, single buffered']
    #allocation3 [shape = 's32[1]{0}', space=sflag, size = 0x4, scoped, tag = 'scoped memory for _forward_core.5']
    %8 = vsyncpa [#allocation3], 0
    // Predicated region
    $region2: #{_forward_core.5} parent=1 // pred_check
      _
    $region3: #{_forward_core.5} parent=1 // pred_check_branch
      %10 = sbr.rel (0) target = $region5
    $region4: #{_forward_core.5} parent=1 // pred_region
      _
    $region5: #{_forward_core.5} parent=1 // pred_fallthru
      _
    // Predicated region
    $region6: #{_forward_core.5} parent=1 // pred_check
      _
    $region7: #{_forward_core.5} parent=1 // pred_check_branch
      %12 = sbr.rel (0) target = $region9
    $region8: #{_forward_core.5} parent=1 // pred_region
      _
    $region9: #{_forward_core.5} parent=1 // pred_fallthru
      _
    // Predicated region
    $region10: #{_forward_core.5} parent=1 // pred_check
      _
    $region11: #{_forward_core.5} parent=1 // pred_check_branch
      %14 = sbr.rel (0) target = $region13
    $region12: #{_forward_core.5} parent=1 // pred_region
      _
    $region13: #{_forward_core.5} parent=1 // pred_fallthru
      _
    %v16 = vld [vmem:[%s0] sm:$0xf]
    %v17 = vld [vmem:[%s0 + $0x4] sm:$0xf]
    %v18 = vld [vmem:[%s1] sm:$0xf]
    %v19 = vld [vmem:[%s1 + $0x4] sm:$0xf]
    %v20 = vld [vmem:[%s1 + $0x8] sm:$0xf]
    %v21 = vld [vmem:[%s1 + $0xc] sm:$0xf]
    %v22 = vld [vmem:[%s2] sm:$0x1]
    %v24 = vlaneseq
    %v25 = vshrl.u32 %v24, 7
    %v26 = vsub.s32 0, %v25
    %v27 = vrot.slane %v22, %v26
    %v31 = vunpack.c.l.b16 %v16
    %v32 = vunpack.c.l.b16 %v17
    %v33 = vpack.c.b16 %v32, %v31
    %v38 = vunpack.c.l.b16 %v18
    %v39 = vunpack.c.l.b16 %v19
    %v40 = vunpack.c.l.b16 %v20
    %v41 = vunpack.c.l.b16 %v21
    %v42 = vpack.c.b16 %v39, %v38
    %v43 = vpack.c.b16 %v41, %v40
    %vm46 = vcmask 261120
    %v48 = vsel %vm46, %v33, 0
    %50 = vmatprep.subr.bf16.mxu0 0
    %51 = vmatpush1.bf16.msra.mxu0 0
    %52 = vmatprep.subr.bf16.mxu0 0
    %53 = vmatpush1.bf16.msra.mxu0 0
    %54 = vmatprep.subr.bf16.mxu0 0
    %55 = vmatpush1.bf16.msra.mxu0 0
    %56 = vmatprep.subr.bf16.mxu0 0
    %57 = vmatpush1.bf16.msra.mxu0 0
    %58 = vmatprep.subr.bf16.mxu0 0
    %59 = vmatpush1.bf16.msra.mxu0 0
    %60 = vmatprep.subr.bf16.mxu0 0
    %61 = vmatpush1.bf16.msra.mxu0 0
    %62 = vmatprep.subr.bf16.mxu0 0
    %63 = vmatpush1.bf16.msra.mxu0 %v43
    %64 = vmatprep.subr.bf16.mxu0 0
    %65 = vmatpush1.bf16.msra.mxu0 %v42
    %66 = vmatprep.subr.bf16.mxu0 0
    %67 = vmatpush2.bf16.msra.mxu0 0
    %68 = vmatprep.subr.bf16.mxu0 0
    %69 = vmatpush2.bf16.msra.mxu0 0
    %70 = vmatprep.subr.bf16.mxu0 0
    %71 = vmatpush2.bf16.msra.mxu0 0
    %72 = vmatprep.subr.bf16.mxu0 0
    %73 = vmatpush2.bf16.msra.mxu0 0
    %74 = vmatprep.subr.bf16.mxu0 0
    %75 = vmatpush2.bf16.msra.mxu0 0
    %76 = vmatprep.subr.bf16.mxu0 0
    %77 = vmatpush2.bf16.msra.mxu0 0
    %78 = vmatprep.subr.bf16.mxu0 0
    %79 = vmatpush2.bf16.msra.mxu0 0
    %80 = vmatprep.subr.bf16.mxu0 0
    %81 = vmatpush2.bf16.msra.mxu0 0
    %82 = vmatprep.mubr.bf16.mxu0 0
    %83 = vmatmul.mubr.bf16.gmra.mxu0 %v48
    %v84 = vpop.f32.mrf.mxu0
    %v85 = vadd.f32 %v27, %v84
    %v86 = vpop.f32.mrf.mxu0
    %v87 = vpop.f32.mrf.mxu0
    %v88 = vadd.f32 %v27, %v87
    %v89 = vpop.f32.mrf.mxu0
    %90 = vdwg.mxu0
    %91 = vst [vmem:[#allocation2] sm:$0xff] %v85
    %92 = vst [vmem:[#allocation2 + $0x8] sm:$0xff] %v88
    // Predicated region
    $region14: #{_forward_core.5} parent=1 // pred_check
      _
    $region15: #{_forward_core.5} parent=1 // pred_check_branch
      %94 = sbr.rel (0) target = $region17
    $region16: #{_forward_core.5} parent=1 // pred_region
      %s96 = ssub.s32 256, 256
      %97 = vsyncadd [#allocation3], %s96
      %s98 = sshll.u32 [#allocation2], 4
      %s99 = int_to_ptr.vmem [resolvable:$true] %s98
      %104 = dma.vmem_to_hbm [thread:$0]  %s99, 256, %s3, [#allocation3], 128, 128, 8
    $region17: #{_forward_core.5} parent=1 // pred_fallthru
      _
    // Predicated region
    $region18: #{_forward_core.5} parent=1 // pred_check
      _
    $region19: #{_forward_core.5} parent=1 // pred_check_branch
      %106 = sbr.rel (0) target = $region21
    $region20: #{_forward_core.5} parent=1 // pred_region
      %107 = dma.done [#allocation3], 256
    $region21: #{_forward_core.5} parent=1 // pred_fallthru
      _
    %108 = vsyncpa [#allocation3], 1

// kernel: _forward_core.4
$region0: #{_forward_core.4}
  #allocation0 [shape = 'u32[]', space=smem, size = 0x4, offset = 0x4, fixed_abs, tag = 'smem constant byte address 0x4 - core index']
  #allocation1 [shape = 'u32[144,128]{1,0:T(1,128)}', space=vmem, size = 0x12000, scoped, tag = 'internal scratch']
  #allocation2 [shape = 'f32[8,32]{1,0:T(8,128)}', space=vmem, size = 0x1000, scoped, tag = 'scratch operand']
  #allocation3 [shape = 'f32[8,32]{1,0:T(8,128)}', space=vmem, size = 0x1000, scoped, tag = 'scratch operand']
  %s0 = inlined_call_operand.vmem [shape: bf16[8,8,128], index: 0, kind: input, shape index: {}]
  %s1 = inlined_call_operand.vmem [shape: s32[8,1], index: 1, kind: input, shape index: {}]
  %s2 = inlined_call_operand.vmem [shape: f32[32,128], index: 2, kind: input, shape index: {}]
  %s3 = inlined_call_operand.vmem [shape: f32[8,32], index: 3, kind: input, shape index: {}]
  %s4 = inlined_call_operand.vmem [shape: f32[8,32], index: 4, kind: input, shape index: {}]
  %s5 = inlined_call_operand.vmem [shape: bf16[8,8,32], index: 5, kind: output, shape index: {0}]
  %s6 = inlined_call_operand.vmem [shape: f32[8,32], index: 6, kind: output, shape index: {1}]
  %s7 = inlined_call_operand.vmem [shape: f32[8,32], index: 7, kind: output, shape index: {2}]
  %8 = xla_tuple %s5, %s6, %s7
  %s9 = sld [smem:[#allocation0]]
  $region54: #{_forward_core.4} parent=0
    _
  %s11 = ssub.s32 1, %s9
  %s12 = scalar_select 0, %s11, %s9
  // Predicated region
  $region2: #{_forward_core.4} parent=0 // pred_check
    _
  $region3: #{_forward_core.4} parent=0 // pred_check_branch
    %14 = sbr.rel (0) target = $region5
  $region4: #{_forward_core.4} parent=0 // pred_region
    _
  $region5: #{_forward_core.4} parent=0 // pred_fallthru
    _
  // Predicated region
  $region6: #{_forward_core.4} parent=0 // pred_check
    _
  $region7: #{_forward_core.4} parent=0 // pred_check_branch
    %16 = sbr.rel (0) target = $region9
  $region8: #{_forward_core.4} parent=0 // pred_region
    _
  $region9: #{_forward_core.4} parent=0 // pred_fallthru
    _
  // Predicated region
  $region10: #{_forward_core.4} parent=0 // pred_check
    _
  $region11: #{_forward_core.4} parent=0 // pred_check_branch
    %18 = sbr.rel (0) target = $region13
  $region12: #{_forward_core.4} parent=0 // pred_region
    _
  $region13: #{_forward_core.4} parent=0 // pred_fallthru
    _
  // Predicated region
  $region14: #{_forward_core.4} parent=0 // pred_check
    _
  $region15: #{_forward_core.4} parent=0 // pred_check_branch
    %20 = sbr.rel (0) target = $region17
  $region16: #{_forward_core.4} parent=0 // pred_region
    _
  $region17: #{_forward_core.4} parent=0 // pred_fallthru
    _
  // Predicated region
  $region18: #{_forward_core.4} parent=0 // pred_check
    _
  $region19: #{_forward_core.4} parent=0 // pred_check_branch
    %22 = sbr.rel (0) target = $region21
  $region20: #{_forward_core.4} parent=0 // pred_region
    _
  $region21: #{_forward_core.4} parent=0 // pred_fallthru
    _
  %p23 = scmp.eq.s32.totalorder 0, 0
  // Predicated region
  $region22: #{_forward_core.4} parent=0 // pred_check
    %p24 = pneg %p23
  $region23: #{_forward_core.4} parent=0 // pred_check_branch
    %26 = sbr.rel (%p24) target = $region25
  $region24: #{_forward_core.4} parent=0 // pred_region
    %v27 = vld [vmem:[%s3] sm:$0xff]
    %vm28 = vcmask 261120
    %29 = vst.msk [vmem:[#allocation2] sm:$0xff] %vm28, %v27
    %v30 = vld [vmem:[%s4] sm:$0xff]
    %31 = vst.msk [vmem:[#allocation3] sm:$0xff] %vm28, %v30
  $region25: #{_forward_core.4} parent=0 // pred_fallthru
    _
  %v32 = vld [vmem:[%s1] sm:$0xff]
  %v33 = vld [vmem:[%s2] sm:$0xff]
  %v34 = vld [vmem:[%s2 + $0x8] sm:$0xff]
  %v35 = vld [vmem:[%s2 + $0x10] sm:$0xff]
  %v36 = vld [vmem:[%s2 + $0x18] sm:$0xff]
  %s37 = smul.u32 0, 8
  %v38 = vld [vmem:[#allocation2] sm:$0xff]
  %v39 = vld [vmem:[#allocation3] sm:$0xff]
  %v40 = vld [vmem:[%s0] sm:$0xf]
  %v41 = vunpack.c.l.bf16 %v40
  %vm42 = vcmask 261120
  %v44 = vsel %vm42, %v38, 0
  %46 = vmatprep.subr.mxu0 0.0
  %47 = vmatpush1.msra.mxu0 0.0
  %48 = vmatprep.subr.mxu0 0.0
  %49 = vmatpush1.msra.mxu0 0.0
  %50 = vmatprep.subr.mxu0 0.0
  %51 = vmatpush1.msra.mxu0 0.0
  %52 = vmatprep.subr.mxu0 0.0
  %53 = vmatpush1.msra.mxu0 0.0
  %54 = vmatprep.subr.mxu0 0.0
  %55 = vmatpush1.msra.mxu0 0.0
  %56 = vmatprep.subr.mxu0 0.0
  %57 = vmatpush1.msra.mxu0 0.0
  %58 = vmatprep.subr.mxu0 0.0
  %59 = vmatpush1.msra.mxu0 0.0
  %60 = vmatprep.subr.mxu0 0.0
  %61 = vmatpush1.msra.mxu0 0.0
  %62 = vmatprep.subr.mxu0 0.0
  %63 = vmatpush1.msra.mxu0 0.0
  %64 = vmatprep.subr.mxu0 0.0
  %65 = vmatpush1.msra.mxu0 0.0
  %66 = vmatprep.subr.mxu0 0.0
  %67 = vmatpush1.msra.mxu0 0.0
  %68 = vmatprep.subr.mxu0 0.0
  %69 = vmatpush1.msra.mxu0 0.0
  %70 = vmatprep.subr.mxu0 0.0
  %71 = vmatpush1.msra.mxu0 %v36
  %72 = vmatprep.subr.mxu0 0.0
  %73 = vmatpush1.msra.mxu0 %v35
  %74 = vmatprep.subr.mxu0 0.0
  %75 = vmatpush1.msra.mxu0 %v34
  %76 = vmatprep.subr.mxu0 0.0
  %77 = vmatpush1.msra.mxu0 %v33
  %78 = vmatprep.subr.mxu0 0.0
  %79 = vmatpush2.msra.mxu0 0.0
  %80 = vmatprep.subr.mxu0 0.0
  %81 = vmatpush2.msra.mxu0 0.0
  %82 = vmatprep.subr.mxu0 0.0
  %83 = vmatpush2.msra.mxu0 0.0
  %84 = vmatprep.subr.mxu0 0.0
  %85 = vmatpush2.msra.mxu0 0.0
  %86 = vmatprep.subr.mxu0 0.0
  %87 = vmatpush2.msra.mxu0 0.0
  %88 = vmatprep.subr.mxu0 0.0
  %89 = vmatpush2.msra.mxu0 0.0
  %90 = vmatprep.subr.mxu0 0.0
  %91 = vmatpush2.msra.mxu0 0.0
  %92 = vmatprep.subr.mxu0 0.0
  %93 = vmatpush2.msra.mxu0 0.0
  %94 = vmatprep.subr.mxu0 0.0
  %95 = vmatpush2.msra.mxu0 0.0
  %96 = vmatprep.subr.mxu0 0.0
  %97 = vmatpush2.msra.mxu0 0.0
  %98 = vmatprep.subr.mxu0 0.0
  %99 = vmatpush2.msra.mxu0 0.0
  %100 = vmatprep.subr.mxu0 0.0
  %101 = vmatpush2.msra.mxu0 0.0
  %102 = vmatprep.subr.mxu0 0.0
  %103 = vmatpush2.msra.mxu0 0.0
  %104 = vmatprep.subr.mxu0 0.0
  %105 = vmatpush2.msra.mxu0 0.0
  %106 = vmatprep.subr.mxu0 0.0
  %107 = vmatpush2.msra.mxu0 0.0
  %108 = vmatprep.subr.mxu0 0.0
  %109 = vmatpush2.msra.mxu0 0.0
  %110 = vmatprep.mubr.f32.mxu0 0.0
  %111 = vmatmul.mubr.f32.gmra.mxu0 %v44
  %v112 = vpop.f32.mrf.mxu0
  %v113 = vadd.f32 0.0, %v112
  %v114 = vpop.f32.mrf.mxu0
  %115 = vdwg.mxu0
  %v116 = vadd.f32 %v41, %v113
  %v117 = vxor.u32 %v116, 2147483648
  %v118 = vmul.f32 %v117, 1.442695
  %v119 = vpow.pop %v118
  %v120 = vadd.f32 %v119, 1.0
  %v121 = vrcp.pop %v120
  %v122 = vmul.f32 1.0, %v121
  %v123 = vtanh.pop %v116
  %125 = vrot.lane.b32.xlu0 %v39, 32
  %v126 = vpop.permute.xlu0 %125
  %v128 = vmul.f32 %v122, %v126
  %130 = vrot.lane.b32.xlu0 %v123, 64
  %v131 = vpop.permute.xlu0 %130
  %v133 = vmul.f32 %v122, %v131
  %135 = vrot.lane.b32.xlu0 %v133, 32
  %v136 = vpop.permute.xlu0 %135
  %v138 = vadd.f32 %v128, %v136
  %v139 = vtanh.pop %v138
  %141 = vrot.lane.b32.xlu0 %v139, 64
  %v142 = vpop.permute.xlu0 %141
  %v144 = vmul.f32 %v122, %v142
  %v145 = vstv %s37
  %vm146 = vcmp.lt.s32.totalorder %v145, %v32
  %v147 = vsel %vm146, 1, 0
  %148 = vset.pattern.permute.xlu0 0
  %149 = vperm.xlu0 %148, %v147
  %v150 = vpop.permute.xlu0 %149
  %vm151 = vcmp.eq.s32.totalorder %v150, 1
  %152 = vrot.lane.b32.xlu0 %v38, 96
  %v153 = vpop.permute.xlu0 %152
  %v155 = vsel %vm151, %v144, %v153
  %157 = vrot.lane.b32.xlu0 %v155, 32
  %v158 = vpop.permute.xlu0 %157
  %160 = vst.msk [vmem:[#allocation2] sm:$0xff] %vm42, %v158
  %v161 = vsel %vm151, %v138, %v126
  %163 = vrot.lane.b32.xlu0 %v161, 96
  %v164 = vpop.permute.xlu0 %163
  %166 = vst.msk [vmem:[#allocation3] sm:$0xff] %vm42, %v164
  %v167 = vsel %vm151, %v144, 0.0
  %v168 = vpack.c.bf16 %v167, %v167
  %v170 = vunpack.c.l.b16 %v168
  %v171 = vpack.c.b16 %v170, %v170
  %172 = vrot.lane.b32.xlu0 %v171, 32
  %v173 = vpop.permute.xlu0 %172
  %vm175 = vcmask 257024
  %176 = vst.msk [vmem:[%s5] sm:$0xf] %vm175, %v173
  %s177 = sadd.s32 %s37, 1
  %v178 = vld [vmem:[#allocation2] sm:$0xff]
  %v179 = vld [vmem:[#allocation3] sm:$0xff]
  %s180 = scalar_lea.vmem %s0, 4
  %v181 = vld [vmem:[%s180] sm:$0xf]
  %v182 = vunpack.c.l.bf16 %v181
  %v184 = vsel %vm42, %v178, 0
  %186 = vmatprep.subr.mxu0 0.0
  %187 = vmatpush1.msra.mxu0 0.0
  %188 = vmatprep.subr.mxu0 0.0
  %189 = vmatpush1.msra.mxu0 0.0
  %190 = vmatprep.subr.mxu0 0.0
  %191 = vmatpush1.msra.mxu0 0.0
  %192 = vmatprep.subr.mxu0 0.0
  %193 = vmatpush1.msra.mxu0 0.0
  %194 = vmatprep.subr.mxu0 0.0
  %195 = vmatpush1.msra.mxu0 0.0
  %196 = vmatprep.subr.mxu0 0.0
  %197 = vmatpush1.msra.mxu0 0.0
  %198 = vmatprep.subr.mxu0 0.0
  %199 = vmatpush1.msra.mxu0 0.0
  %200 = vmatprep.subr.mxu0 0.0
  %201 = vmatpush1.msra.mxu0 0.0
  %202 = vmatprep.subr.mxu0 0.0
  %203 = vmatpush1.msra.mxu0 0.0
  %204 = vmatprep.subr.mxu0 0.0
  %205 = vmatpush1.msra.mxu0 0.0
  %206 = vmatprep.subr.mxu0 0.0
  %207 = vmatpush1.msra.mxu0 0.0
  %208 = vmatprep.subr.mxu0 0.0
  %209 = vmatpush1.msra.mxu0 0.0
  %210 = vmatprep.subr.mxu0 0.0
  %211 = vmatpush1.msra.mxu0 %v36
  %212 = vmatprep.subr.mxu0 0.0
  %213 = vmatpush1.msra.mxu0 %v35
  %214 = vmatprep.subr.mxu0 0.0
  %215 = vmatpush1.msra.mxu0 %v34
  %216 = vmatprep.subr.mxu0 0.0
  %217 = vmatpush1.msra.mxu0 %v33
  %218 = vmatprep.subr.mxu0 0.0
  %219 = vmatpush2.msra.mxu0 0.0
  %220 = vmatprep.subr.mxu0 0.0
  %221 = vmatpush2.msra.mxu0 0.0
  %222 = vmatprep.subr.mxu0 0.0
  %223 = vmatpush2.msra.mxu0 0.0
  %224 = vmatprep.subr.mxu0 0.0
  %225 = vmatpush2.msra.mxu0 0.0
  %226 = vmatprep.subr.mxu0 0.0
  %227 = vmatpush2.msra.mxu0 0.0
  %228 = vmatprep.subr.mxu0 0.0
  %229 = vmatpush2.msra.mxu0 0.0
  %230 = vmatprep.subr.mxu0 0.0
  %231 = vmatpush2.msra.mxu0 0.0
  %232 = vmatprep.subr.mxu0 0.0
  %233 = vmatpush2.msra.mxu0 0.0
  %234 = vmatprep.subr.mxu0 0.0
  %235 = vmatpush2.msra.mxu0 0.0
  %236 = vmatprep.subr.mxu0 0.0
  %237 = vmatpush2.msra.mxu0 0.0
  %238 = vmatprep.subr.mxu0 0.0
  %239 = vmatpush2.msra.mxu0 0.0
  %240 = vmatprep.subr.mxu0 0.0
  %241 = vmatpush2.msra.mxu0 0.0
  %242 = vmatprep.subr.mxu0 0.0
  %243 = vmatpush2.msra.mxu0 0.0
  %244 = vmatprep.subr.mxu0 0.0
  %245 = vmatpush2.msra.mxu0 0.0
  %246 = vmatprep.subr.mxu0 0.0
  %247 = vmatpush2.msra.mxu0 0.0
  %248 = vmatprep.subr.mxu0 0.0
  %249 = vmatpush2.msra.mxu0 0.0
  %250 = vmatprep.mubr.f32.mxu0 0.0
  %251 = vmatmul.mubr.f32.gmra.mxu0 %v184
  %v252 = vpop.f32.mrf.mxu0
  %v253 = vadd.f32 0.0, %v252
  %v254 = vpop.f32.mrf.mxu0
  %255 = vdwg.mxu0
  %v256 = vadd.f32 %v182, %v253
  %v257 = vxor.u32 %v256, 2147483648
  %v258 = vmul.f32 %v257, 1.442695
  %v259 = vpow.pop %v258
  %v260 = vadd.f32 %v259, 1.0
  %v261 = vrcp.pop %v260
  %v262 = vmul.f32 1.0, %v261
  %v263 = vtanh.pop %v256
  %265 = vrot.lane.b32.xlu0 %v179, 32
  %v266 = vpop.permute.xlu0 %265
  %v268 = vmul.f32 %v262, %v266
  %270 = vrot.lane.b32.xlu0 %v263, 64
  %v271 = vpop.permute.xlu0 %270
  %v273 = vmul.f32 %v262, %v271
  %275 = vrot.lane.b32.xlu0 %v273, 32
  %v276 = vpop.permute.xlu0 %275
  %v278 = vadd.f32 %v268, %v276
  %v279 = vtanh.pop %v278
  %281 = vrot.lane.b32.xlu0 %v279, 64
  %v282 = vpop.permute.xlu0 %281
  %v284 = vmul.f32 %v262, %v282
  %v285 = vstv %s177
  %vm286 = vcmp.lt.s32.totalorder %v285, %v32
  %v287 = vsel %vm286, 1, 0
  %288 = vset.pattern.permute.xlu0 0
  %289 = vperm.xlu0 %288, %v287
  %v290 = vpop.permute.xlu0 %289
  %vm291 = vcmp.eq.s32.totalorder %v290, 1
  %292 = vrot.lane.b32.xlu0 %v178, 96
  %v293 = vpop.permute.xlu0 %292
  %v295 = vsel %vm291, %v284, %v293
  %297 = vrot.lane.b32.xlu0 %v295, 32
  %v298 = vpop.permute.xlu0 %297
  %300 = vst.msk [vmem:[#allocation2] sm:$0xff] %vm42, %v298
  %v301 = vsel %vm291, %v278, %v266
  %303 = vrot.lane.b32.xlu0 %v301, 96
  %v304 = vpop.permute.xlu0 %303
  %306 = vst.msk [vmem:[#allocation3] sm:$0xff] %vm42, %v304
  %v307 = vsel %vm291, %v284, 0.0
  %v308 = vpack.c.bf16 %v307, %v307
  %v310 = vunpack.c.l.b16 %v308
  %v311 = vpack.c.b16 %v310, %v310
  %312 = vrot.lane.b32.xlu0 %v311, 32
  %v313 = vpop.permute.xlu0 %312
  %s315 = scalar_lea.vmem %s5, 4
  %316 = vst.msk [vmem:[%s315] sm:$0xf] %vm175, %v313
  %s317 = sadd.s32 %s37, 2
  %v318 = vld [vmem:[#allocation2] sm:$0xff]
  %v319 = vld [vmem:[#allocation3] sm:$0xff]
  %s320 = scalar_lea.vmem %s0, 8
  %v321 = vld [vmem:[%s320] sm:$0xf]
  %v322 = vunpack.c.l.bf16 %v321
  %v324 = vsel %vm42, %v318, 0
  %326 = vmatprep.subr.mxu0 0.0
  %327 = vmatpush1.msra.mxu0 0.0
  %328 = vmatprep.subr.mxu0 0.0
  %329 = vmatpush1.msra.mxu0 0.0
  %330 = vmatprep.subr.mxu0 0.0
  %331 = vmatpush1.msra.mxu0 0.0
  %332 = vmatprep.subr.mxu0 0.0
  %333 = vmatpush1.msra.mxu0 0.0
  %334 = vmatprep.subr.mxu0 0.0
  %335 = vmatpush1.msra.mxu0 0.0
  %336 = vmatprep.subr.mxu0 0.0
  %337 = vmatpush1.msra.mxu0 0.0
  %338 = vmatprep.subr.mxu0 0.0
  %339 = vmatpush1.msra.mxu0 0.0
  %340 = vmatprep.subr.mxu0 0.0
  %341 = vmatpush1.msra.mxu0 0.0
  %342 = vmatprep.subr.mxu0 0.0
  %343 = vmatpush1.msra.mxu0 0.0
  %344 = vmatprep.subr.mxu0 0.0
  %345 = vmatpush1.msra.mxu0 0.0
  %346 = vmatprep.subr.mxu0 0.0
  %347 = vmatpush1.msra.mxu0 0.0
  %348 = vmatprep.subr.mxu0 0.0
  %349 = vmatpush1.msra.mxu0 0.0
  %350 = vmatprep.subr.mxu0 0.0
  %351 = vmatpush1.msra.mxu0 %v36
  %352 = vmatprep.subr.mxu0 0.0
  %353 = vmatpush1.msra.mxu0 %v35
  %354 = vmatprep.subr.mxu0 0.0
  %355 = vmatpush1.msra.mxu0 %v34
  %356 = vmatprep.subr.mxu0 0.0
  %357 = vmatpush1.msra.mxu0 %v33
  %358 = vmatprep.subr.mxu0 0.0
  %359 = vmatpush2.msra.mxu0 0.0
  %360 = vmatprep.subr.mxu0 0.0
  %361 = vmatpush2.msra.mxu0 0.0
  %362 = vmatprep.subr.mxu0 0.0
  %363 = vmatpush2.msra.mxu0 0.0
  %364 = vmatprep.subr.mxu0 0.0
  %365 = vmatpush2.msra.mxu0 0.0
  %366 = vmatprep.subr.mxu0 0.0
  %367 = vmatpush2.msra.mxu0 0.0
  %368 = vmatprep.subr.mxu0 0.0
  %369 = vmatpush2.msra.mxu0 0.0
  %370 = vmatprep.subr.mxu0 0.0
  %371 = vmatpush2.msra.mxu0 0.0
  %372 = vmatprep.subr.mxu0 0.0
  %373 = vmatpush2.msra.mxu0 0.0
  %374 = vmatprep.subr.mxu0 0.0
  %375 = vmatpush2.msra.mxu0 0.0
  %376 = vmatprep.subr.mxu0 0.0
  %377 = vmatpush2.msra.mxu0 0.0
  %378 = vmatprep.subr.mxu0 0.0
  %379 = vmatpush2.msra.mxu0 0.0
  %380 = vmatprep.subr.mxu0 0.0
  %381 = vmatpush2.msra.mxu0 0.0
  %382 = vmatprep.subr.mxu0 0.0
  %383 = vmatpush2.msra.mxu0 0.0
  %384 = vmatprep.subr.mxu0 0.0
  %385 = vmatpush2.msra.mxu0 0.0
  %386 = vmatprep.subr.mxu0 0.0
  %387 = vmatpush2.msra.mxu0 0.0
  %388 = vmatprep.subr.mxu0 0.0
  %389 = vmatpush2.msra.mxu0 0.0
  %390 = vmatprep.mubr.f32.mxu0 0.0
  %391 = vmatmul.mubr.f32.gmra.mxu0 %v324
  %v392 = vpop.f32.mrf.mxu0
  %v393 = vadd.f32 0.0, %v392
  %v394 = vpop.f32.mrf.mxu0
  %395 = vdwg.mxu0
  %v396 = vadd.f32 %v322, %v393
  %v397 = vxor.u32 %v396, 2147483648
  %v398 = vmul.f32 %v397, 1.442695
  %v399 = vpow.pop %v398
  %v400 = vadd.f32 %v399, 1.0
  %v401 = vrcp.pop %v400
  %v402 = vmul.f32 1.0, %v401
  %v403 = vtanh.pop %v396
  %405 = vrot.lane.b32.xlu0 %v319, 32
  %v406 = vpop.permute.xlu0 %405
  %v408 = vmul.f32 %v402, %v406
  %410 = vrot.lane.b32.xlu0 %v403, 64
  %v411 = vpop.permute.xlu0 %410
  %v413 = vmul.f32 %v402, %v411
  %415 = vrot.lane.b32.xlu0 %v413, 32
  %v416 = vpop.permute.xlu0 %415
  %v418 = vadd.f32 %v408, %v416
  %v419 = vtanh.pop %v418
  %421 = vrot.lane.b32.xlu0 %v419, 64
  %v422 = vpop.permute.xlu0 %421
  %v424 = vmul.f32 %v402, %v422
  %v425 = vstv %s317
  %vm426 = vcmp.lt.s32.totalorder %v425, %v32
  %v427 = vsel %vm426, 1, 0
  %428 = vset.pattern.permute.xlu0 0
  %429 = vperm.xlu0 %428, %v427
  %v430 = vpop.permute.xlu0 %429
  %vm431 = vcmp.eq.s32.totalorder %v430, 1
  %432 = vrot.lane.b32.xlu0 %v318, 96
  %v433 = vpop.permute.xlu0 %432
  %v435 = vsel %vm431, %v424, %v433
  %437 = vrot.lane.b32.xlu0 %v435, 32
  %v438 = vpop.permute.xlu0 %437
  %440 = vst.msk [vmem:[#allocation2] sm:$0xff] %vm42, %v438
  %v441 = vsel %vm431, %v418, %v406
  %443 = vrot.lane.b32.xlu0 %v441, 96
  %v444 = vpop.permute.xlu0 %443
  %446 = vst.msk [vmem:[#allocation3] sm:$0xff] %vm42, %v444
  %v447 = vsel %vm431, %v424, 0.0
  %v448 = vpack.c.bf16 %v447, %v447
  %v450 = vunpack.c.l.b16 %v448
  %v451 = vpack.c.b16 %v450, %v450
  %452 = vrot.lane.b32.xlu0 %v451, 32
  %v453 = vpop.permute.xlu0 %452
  %s455 = scalar_lea.vmem %s5, 8
  %456 = vst.msk [vmem:[%s455] sm:$0xf] %vm175, %v453
  %s457 = sadd.s32 %s37, 3
  %v458 = vld [vmem:[#allocation2] sm:$0xff]
  %v459 = vld [vmem:[#allocation3] sm:$0xff]
  %s460 = scalar_lea.vmem %s0, 12
  %v461 = vld [vmem:[%s460] sm:$0xf]
  %v462 = vunpack.c.l.bf16 %v461
  %v464 = vsel %vm42, %v458, 0
  %466 = vmatprep.subr.mxu0 0.0
  %467 = vmatpush1.msra.mxu0 0.0
  %468 = vmatprep.subr.mxu0 0.0
  %469 = vmatpush1.msra.mxu0 0.0
  %470 = vmatprep.subr.mxu0 0.0
  %471 = vmatpush1.msra.mxu0 0.0
  %472 = vmatprep.subr.mxu0 0.0
  %473 = vmatpush1.msra.mxu0 0.0
  %474 = vmatprep.subr.mxu0 0.0
  %475 = vmatpush1.msra.mxu0 0.0
  %476 = vmatprep.subr.mxu0 0.0
  %477 = vmatpush1.msra.mxu0 0.0
  %478 = vmatprep.subr.mxu0 0.0
  %479 = vmatpush1.msra.mxu0 0.0
  %480 = vmatprep.subr.mxu0 0.0
  %481 = vmatpush1.msra.mxu0 0.0
  %482 = vmatprep.subr.mxu0 0.0
  %483 = vmatpush1.msra.mxu0 0.0
  %484 = vmatprep.subr.mxu0 0.0
  %485 = vmatpush1.msra.mxu0 0.0
  %486 = vmatprep.subr.mxu0 0.0
  %487 = vmatpush1.msra.mxu0 0.0
  %488 = vmatprep.subr.mxu0 0.0
  %489 = vmatpush1.msra.mxu0 0.0
  %490 = vmatprep.subr.mxu0 0.0
  %491 = vmatpush1.msra.mxu0 %v36
  %492 = vmatprep.subr.mxu0 0.0
  %493 = vmatpush1.msra.mxu0 %v35
  %494 = vmatprep.subr.mxu0 0.0
  %495 = vmatpush1.msra.mxu0 %v34
  %496 = vmatprep.subr.mxu0 0.0
  %497 = vmatpush1.msra.mxu0 %v33
  %498 = vmatprep.subr.mxu0 0.0
  %499 = vmatpush2.msra.mxu0 0.0
  %500 = vmatprep.subr.mxu0 0.0
  %501 = vmatpush2.msra.mxu0 0.0
  %502 = vmatprep.subr.mxu0 0.0
  %503 = vmatpush2.msra.mxu0 0.0
  %504 = vmatprep.subr.mxu0 0.0
  %505 = vmatpush2.msra.mxu0 0.0
  %506 = vmatprep.subr.mxu0 0.0
  %507 = vmatpush2.msra.mxu0 0.0
  %508 = vmatprep.subr.mxu0 0.0
  %509 = vmatpush2.msra.mxu0 0.0
  %510 = vmatprep.subr.mxu0 0.0
  %511 = vmatpush2.msra.mxu0 0.0
  %512 = vmatprep.subr.mxu0 0.0
  %513 = vmatpush2.msra.mxu0 0.0
  %514 = vmatprep.subr.mxu0 0.0
  %515 = vmatpush2.msra.mxu0 0.0
  %516 = vmatprep.subr.mxu0 0.0
  %517 = vmatpush2.msra.mxu0 0.0
  %518 = vmatprep.subr.mxu0 0.0
  %519 = vmatpush2.msra.mxu0 0.0
  %520 = vmatprep.subr.mxu0 0.0
  %521 = vmatpush2.msra.mxu0 0.0
  %522 = vmatprep.subr.mxu0 0.0
  %523 = vmatpush2.msra.mxu0 0.0
  %524 = vmatprep.subr.mxu0 0.0
  %525 = vmatpush2.msra.mxu0 0.0
  %526 = vmatprep.subr.mxu0 0.0
  %527 = vmatpush2.msra.mxu0 0.0
  %528 = vmatprep.subr.mxu0 0.0
  %529 = vmatpush2.msra.mxu0 0.0
  %530 = vmatprep.mubr.f32.mxu0 0.0
  %531 = vmatmul.mubr.f32.gmra.mxu0 %v464
  %v532 = vpop.f32.mrf.mxu0
  %v533 = vadd.f32 0.0, %v532
  %v534 = vpop.f32.mrf.mxu0
  %535 = vdwg.mxu0
  %v536 = vadd.f32 %v462, %v533
  %v537 = vxor.u32 %v536, 2147483648
  %v538 = vmul.f32 %v537, 1.442695
  %v539 = vpow.pop %v538
  %v540 = vadd.f32 %v539, 1.0
  %v541 = vrcp.pop %v540
  %v542 = vmul.f32 1.0, %v541
  %v543 = vtanh.pop %v536
  %545 = vrot.lane.b32.xlu0 %v459, 32
  %v546 = vpop.permute.xlu0 %545
  %v548 = vmul.f32 %v542, %v546
  %550 = vrot.lane.b32.xlu0 %v543, 64
  %v551 = vpop.permute.xlu0 %550
  %v553 = vmul.f32 %v542, %v551
  %555 = vrot.lane.b32.xlu0 %v553, 32
  %v556 = vpop.permute.xlu0 %555
  %v558 = vadd.f32 %v548, %v556
  %v559 = vtanh.pop %v558
  %561 = vrot.lane.b32.xlu0 %v559, 64
  %v562 = vpop.permute.xlu0 %561
  %v564 = vmul.f32 %v542, %v562
  %v565 = vstv %s457
  %vm566 = vcmp.lt.s32.totalorder %v565, %v32
  %v567 = vsel %vm566, 1, 0
  %568 = vset.pattern.permute.xlu0 0
  %569 = vperm.xlu0 %568, %v567
  %v570 = vpop.permute.xlu0 %569
  %vm571 = vcmp.eq.s32.totalorder %v570, 1
  %572 = vrot.lane.b32.xlu0 %v458, 96
  %v573 = vpop.permute.xlu0 %572
  %v575 = vsel %vm571, %v564, %v573
  %577 = vrot.lane.b32.xlu0 %v575, 32
  %v578 = vpop.permute.xlu0 %577
  %580 = vst.msk [vmem:[#allocation2] sm:$0xff] %vm42, %v578
  %v581 = vsel %vm571, %v558, %v546
  %583 = vrot.lane.b32.xlu0 %v581, 96
  %v584 = vpop.permute.xlu0 %583
  %586 = vst.msk [vmem:[#allocation3] sm:$0xff] %vm42, %v584
  %v587 = vsel %vm571, %v564, 0.0
  %v588 = vpack.c.bf16 %v587, %v587
  %v590 = vunpack.c.l.b16 %v588
  %v591 = vpack.c.b16 %v590, %v590
  %592 = vrot.lane.b32.xlu0 %v591, 32
  %v593 = vpop.permute.xlu0 %592
  %s595 = scalar_lea.vmem %s5, 12
  %596 = vst.msk [vmem:[%s595] sm:$0xf] %vm175, %v593
  %s597 = sadd.s32 %s37, 4
  %v598 = vld [vmem:[#allocation2] sm:$0xff]
  %v599 = vld [vmem:[#allocation3] sm:$0xff]
  %s600 = scalar_lea.vmem %s0, 16
  %v601 = vld [vmem:[%s600] sm:$0xf]
  %v602 = vunpack.c.l.bf16 %v601
  %v604 = vsel %vm42, %v598, 0
  %606 = vmatprep.subr.mxu0 0.0
  %607 = vmatpush1.msra.mxu0 0.0
  %608 = vmatprep.subr.mxu0 0.0
  %609 = vmatpush1.msra.mxu0 0.0
  %610 = vmatprep.subr.mxu0 0.0
  %611 = vmatpush1.msra.mxu0 0.0
  %612 = vmatprep.subr.mxu0 0.0
  %613 = vmatpush1.msra.mxu0 0.0
  %614 = vmatprep.subr.mxu0 0.0
  %615 = vmatpush1.msra.mxu0 0.0
  %616 = vmatprep.subr.mxu0 0.0
  %617 = vmatpush1.msra.mxu0 0.0
  %618 = vmatprep.subr.mxu0 0.0
  %619 = vmatpush1.msra.mxu0 0.0
  %620 = vmatprep.subr.mxu0 0.0
  %621 = vmatpush1.msra.mxu0 0.0
  %622 = vmatprep.subr.mxu0 0.0
  %623 = vmatpush1.msra.mxu0 0.0
  %624 = vmatprep.subr.mxu0 0.0
  %625 = vmatpush1.msra.mxu0 0.0
  %626 = vmatprep.subr.mxu0 0.0
  %627 = vmatpush1.msra.mxu0 0.0
  %628 = vmatprep.subr.mxu0 0.0
  %629 = vmatpush1.msra.mxu0 0.0
  %630 = vmatprep.subr.mxu0 0.0
  %631 = vmatpush1.msra.mxu0 %v36
  %632 = vmatprep.subr.mxu0 0.0
  %633 = vmatpush1.msra.mxu0 %v35
  %634 = vmatprep.subr.mxu0 0.0
  %635 = vmatpush1.msra.mxu0 %v34
  %636 = vmatprep.subr.mxu0 0.0
  %637 = vmatpush1.msra.mxu0 %v33
  %638 = vmatprep.subr.mxu0 0.0
  %639 = vmatpush2.msra.mxu0 0.0
  %640 = vmatprep.subr.mxu0 0.0
  %641 = vmatpush2.msra.mxu0 0.0
  %642 = vmatprep.subr.mxu0 0.0
  %643 = vmatpush2.msra.mxu0 0.0
  %644 = vmatprep.subr.mxu0 0.0
  %645 = vmatpush2.msra.mxu0 0.0
  %646 = vmatprep.subr.mxu0 0.0
  %647 = vmatpush2.msra.mxu0 0.0
  %648 = vmatprep.subr.mxu0 0.0
  %649 = vmatpush2.msra.mxu0 0.0
  %650 = vmatprep.subr.mxu0 0.0
  %651 = vmatpush2.msra.mxu0 0.0
  %652 = vmatprep.subr.mxu0 0.0
  %653 = vmatpush2.msra.mxu0 0.0
  %654 = vmatprep.subr.mxu0 0.0
  %655 = vmatpush2.msra.mxu0 0.0
  %656 = vmatprep.subr.mxu0 0.0
  %657 = vmatpush2.msra.mxu0 0.0
  %658 = vmatprep.subr.mxu0 0.0
  %659 = vmatpush2.msra.mxu0 0.0
  %660 = vmatprep.subr.mxu0 0.0
  %661 = vmatpush2.msra.mxu0 0.0
  %662 = vmatprep.subr.mxu0 0.0
  %663 = vmatpush2.msra.mxu0 0.0
  %664 = vmatprep.subr.mxu0 0.0
  %665 = vmatpush2.msra.mxu0 0.0
  %666 = vmatprep.subr.mxu0 0.0
  %667 = vmatpush2.msra.mxu0 0.0
  %668 = vmatprep.subr.mxu0 0.0
  %669 = vmatpush2.msra.mxu0 0.0
  %670 = vmatprep.mubr.f32.mxu0 0.0
  %671 = vmatmul.mubr.f32.gmra.mxu0 %v604
  %v672 = vpop.f32.mrf.mxu0
  %v673 = vadd.f32 0.0, %v672
  %v674 = vpop.f32.mrf.mxu0
  %675 = vdwg.mxu0
  %v676 = vadd.f32 %v602, %v673
  %v677 = vxor.u32 %v676, 2147483648
  %v678 = vmul.f32 %v677, 1.442695
  %v679 = vpow.pop %v678
  %v680 = vadd.f32 %v679, 1.0
  %v681 = vrcp.pop %v680
  %v682 = vmul.f32 1.0, %v681
  %v683 = vtanh.pop %v676
  %685 = vrot.lane.b32.xlu0 %v599, 32
  %v686 = vpop.permute.xlu0 %685
  %v688 = vmul.f32 %v682, %v686
  %690 = vrot.lane.b32.xlu0 %v683, 64
  %v691 = vpop.permute.xlu0 %690
  %v693 = vmul.f32 %v682, %v691
  %695 = vrot.lane.b32.xlu0 %v693, 32
  %v696 = vpop.permute.xlu0 %695
  %v698 = vadd.f32 %v688, %v696
  %v699 = vtanh.pop %v698
  %701 = vrot.lane.b32.xlu0 %v699, 64
  %v702 = vpop.permute.xlu0 %701
  %v704 = vmul.f32 %v682, %v702
  %v705 = vstv %s597
  %vm706 = vcmp.lt.s32.totalorder %v705, %v32
  %v707 = vsel %vm706, 1, 0
  %708 = vset.pattern.permute.xlu0 0
  %709 = vperm.xlu0 %708, %v707
  %v710 = vpop.permute.xlu0 %709
  %vm711 = vcmp.eq.s32.totalorder %v710, 1
  %712 = vrot.lane.b32.xlu0 %v598, 96
  %v713 = vpop.permute.xlu0 %712
  %v715 = vsel %vm711, %v704, %v713
  %717 = vrot.lane.b32.xlu0 %v715, 32
  %v718 = vpop.permute.xlu0 %717
  %720 = vst.msk [vmem:[#allocation2] sm:$0xff] %vm42, %v718
  %v721 = vsel %vm711, %v698, %v686
  %723 = vrot.lane.b32.xlu0 %v721, 96
  %v724 = vpop.permute.xlu0 %723
  %726 = vst.msk [vmem:[#allocation3] sm:$0xff] %vm42, %v724
  %v727 = vsel %vm711, %v704, 0.0
  %v728 = vpack.c.bf16 %v727, %v727
  %v730 = vunpack.c.l.b16 %v728
  %v731 = vpack.c.b16 %v730, %v730
  %732 = vrot.lane.b32.xlu0 %v731, 32
  %v733 = vpop.permute.xlu0 %732
  %s735 = scalar_lea.vmem %s5, 16
  %736 = vst.msk [vmem:[%s735] sm:$0xf] %vm175, %v733
  %s737 = sadd.s32 %s37, 5
  %v738 = vld [vmem:[#allocation2] sm:$0xff]
  %v739 = vld [vmem:[#allocation3] sm:$0xff]
  %s740 = scalar_lea.vmem %s0, 20
  %v741 = vld [vmem:[%s740] sm:$0xf]
  %v742 = vunpack.c.l.bf16 %v741
  %v744 = vsel %vm42, %v738, 0
  %746 = vmatprep.subr.mxu0 0.0
  %747 = vmatpush1.msra.mxu0 0.0
  %748 = vmatprep.subr.mxu0 0.0
  %749 = vmatpush1.msra.mxu0 0.0
  %750 = vmatprep.subr.mxu0 0.0
  %751 = vmatpush1.msra.mxu0 0.0
  %752 = vmatprep.subr.mxu0 0.0
  %753 = vmatpush1.msra.mxu0 0.0
  %754 = vmatprep.subr.mxu0 0.0
  %755 = vmatpush1.msra.mxu0 0.0
  %756 = vmatprep.subr.mxu0 0.0
  %757 = vmatpush1.msra.mxu0 0.0
  %758 = vmatprep.subr.mxu0 0.0
  %759 = vmatpush1.msra.mxu0 0.0
  %760 = vmatprep.subr.mxu0 0.0
  %761 = vmatpush1.msra.mxu0 0.0
  %762 = vmatprep.subr.mxu0 0.0
  %763 = vmatpush1.msra.mxu0 0.0
  %764 = vmatprep.subr.mxu0 0.0
  %765 = vmatpush1.msra.mxu0 0.0
  %766 = vmatprep.subr.mxu0 0.0
  %767 = vmatpush1.msra.mxu0 0.0
  %768 = vmatprep.subr.mxu0 0.0
  %769 = vmatpush1.msra.mxu0 0.0
  %770 = vmatprep.subr.mxu0 0.0
  %771 = vmatpush1.msra.mxu0 %v36
  %772 = vmatprep.subr.mxu0 0.0
  %773 = vmatpush1.msra.mxu0 %v35
  %774 = vmatprep.subr.mxu0 0.0
  %775 = vmatpush1.msra.mxu0 %v34
  %776 = vmatprep.subr.mxu0 0.0
  %777 = vmatpush1.msra.mxu0 %v33
  %778 = vmatprep.subr.mxu0 0.0
  %779 = vmatpush2.msra.mxu0 0.0
  %780 = vmatprep.subr.mxu0 0.0
  %781 = vmatpush2.msra.mxu0 0.0
  %782 = vmatprep.subr.mxu0 0.0
  %783 = vmatpush2.msra.mxu0 0.0
  %784 = vmatprep.subr.mxu0 0.0
  %785 = vmatpush2.msra.mxu0 0.0
  %786 = vmatprep.subr.mxu0 0.0
  %787 = vmatpush2.msra.mxu0 0.0
  %788 = vmatprep.subr.mxu0 0.0
  %789 = vmatpush2.msra.mxu0 0.0
  %790 = vmatprep.subr.mxu0 0.0
  %791 = vmatpush2.msra.mxu0 0.0
  %792 = vmatprep.subr.mxu0 0.0
  %793 = vmatpush2.msra.mxu0 0.0
  %794 = vmatprep.subr.mxu0 0.0
  %795 = vmatpush2.msra.mxu0 0.0
  %796 = vmatprep.subr.mxu0 0.0
  %797 = vmatpush2.msra.mxu0 0.0
  %798 = vmatprep.subr.mxu0 0.0
  %799 = vmatpush2.msra.mxu0 0.0
  %800 = vmatprep.subr.mxu0 0.0
  %801 = vmatpush2.msra.mxu0 0.0
  %802 = vmatprep.subr.mxu0 0.0
  %803 = vmatpush2.msra.mxu0 0.0
  %804 = vmatprep.subr.mxu0 0.0
  %805 = vmatpush2.msra.mxu0 0.0
  %806 = vmatprep.subr.mxu0 0.0
  %807 = vmatpush2.msra.mxu0 0.0
  %808 = vmatprep.subr.mxu0 0.0
  %809 = vmatpush2.msra.mxu0 0.0
  %810 = vmatprep.mubr.f32.mxu0 0.0
  %811 = vmatmul.mubr.f32.gmra.mxu0 %v744
  %v812 = vpop.f32.mrf.mxu0
  %v813 = vadd.f32 0.0, %v812
  %v814 = vpop.f32.mrf.mxu0
  %815 = vdwg.mxu0
  %v816 = vadd.f32 %v742, %v813
  %v817 = vxor.u32 %v816, 2147483648
  %v818 = vmul.f32 %v817, 1.442695
  %v819 = vpow.pop %v818
  %v820 = vadd.f32 %v819, 1.0
  %v821 = vrcp.pop %v820
  %v822 = vmul.f32 1.0, %v821
  %v823 = vtanh.pop %v816
  %825 = vrot.lane.b32.xlu0 %v739, 32
  %v826 = vpop.permute.xlu0 %825
  %v828 = vmul.f32 %v822, %v826
  %830 = vrot.lane.b32.xlu0 %v823, 64
  %v831 = vpop.permute.xlu0 %830
  %v833 = vmul.f32 %v822, %v831
  %835 = vrot.lane.b32.xlu0 %v833, 32
  %v836 = vpop.permute.xlu0 %835
  %v838 = vadd.f32 %v828, %v836
  %v839 = vtanh.pop %v838
  %841 = vrot.lane.b32.xlu0 %v839, 64
  %v842 = vpop.permute.xlu0 %841
  %v844 = vmul.f32 %v822, %v842
  %v845 = vstv %s737
  %vm846 = vcmp.lt.s32.totalorder %v845, %v32
  %v847 = vsel %vm846, 1, 0
  %848 = vset.pattern.permute.xlu0 0
  %849 = vperm.xlu0 %848, %v847
  %v850 = vpop.permute.xlu0 %849
  %vm851 = vcmp.eq.s32.totalorder %v850, 1
  %852 = vrot.lane.b32.xlu0 %v738, 96
  %v853 = vpop.permute.xlu0 %852
  %v855 = vsel %vm851, %v844, %v853
  %857 = vrot.lane.b32.xlu0 %v855, 32
  %v858 = vpop.permute.xlu0 %857
  %860 = vst.msk [vmem:[#allocation2] sm:$0xff] %vm42, %v858
  %v861 = vsel %vm851, %v838, %v826
  %863 = vrot.lane.b32.xlu0 %v861, 96
  %v864 = vpop.permute.xlu0 %863
  %866 = vst.msk [vmem:[#allocation3] sm:$0xff] %vm42, %v864
  %v867 = vsel %vm851, %v844, 0.0
  %v868 = vpack.c.bf16 %v867, %v867
  %v870 = vunpack.c.l.b16 %v868
  %v871 = vpack.c.b16 %v870, %v870
  %872 = vrot.lane.b32.xlu0 %v871, 32
  %v873 = vpop.permute.xlu0 %872
  %s875 = scalar_lea.vmem %s5, 20
  %876 = vst.msk [vmem:[%s875] sm:$0xf] %vm175, %v873
  %s877 = sadd.s32 %s37, 6
  %v878 = vld [vmem:[#allocation2] sm:$0xff]
  %v879 = vld [vmem:[#allocation3] sm:$0xff]
  %s880 = scalar_lea.vmem %s0, 24
  %v881 = vld [vmem:[%s880] sm:$0xf]
  %v882 = vunpack.c.l.bf16 %v881
  %v884 = vsel %vm42, %v878, 0
  %886 = vmatprep.subr.mxu0 0.0
  %887 = vmatpush1.msra.mxu0 0.0
  %888 = vmatprep.subr.mxu0 0.0
  %889 = vmatpush1.msra.mxu0 0.0
  %890 = vmatprep.subr.mxu0 0.0
  %891 = vmatpush1.msra.mxu0 0.0
  %892 = vmatprep.subr.mxu0 0.0
  %893 = vmatpush1.msra.mxu0 0.0
  %894 = vmatprep.subr.mxu0 0.0
  %895 = vmatpush1.msra.mxu0 0.0
  %896 = vmatprep.subr.mxu0 0.0
  %897 = vmatpush1.msra.mxu0 0.0
  %898 = vmatprep.subr.mxu0 0.0
  %899 = vmatpush1.msra.mxu0 0.0
  %900 = vmatprep.subr.mxu0 0.0
  %901 = vmatpush1.msra.mxu0 0.0
  %902 = vmatprep.subr.mxu0 0.0
  %903 = vmatpush1.msra.mxu0 0.0
  %904 = vmatprep.subr.mxu0 0.0
  %905 = vmatpush1.msra.mxu0 0.0
  %906 = vmatprep.subr.mxu0 0.0
  %907 = vmatpush1.msra.mxu0 0.0
  %908 = vmatprep.subr.mxu0 0.0
  %909 = vmatpush1.msra.mxu0 0.0
  %910 = vmatprep.subr.mxu0 0.0
  %911 = vmatpush1.msra.mxu0 %v36
  %912 = vmatprep.subr.mxu0 0.0
  %913 = vmatpush1.msra.mxu0 %v35
  %914 = vmatprep.subr.mxu0 0.0
  %915 = vmatpush1.msra.mxu0 %v34
  %916 = vmatprep.subr.mxu0 0.0
  %917 = vmatpush1.msra.mxu0 %v33
  %918 = vmatprep.subr.mxu0 0.0
  %919 = vmatpush2.msra.mxu0 0.0
  %920 = vmatprep.subr.mxu0 0.0
  %921 = vmatpush2.msra.mxu0 0.0
  %922 = vmatprep.subr.mxu0 0.0
  %923 = vmatpush2.msra.mxu0 0.0
  %924 = vmatprep.subr.mxu0 0.0
  %925 = vmatpush2.msra.mxu0 0.0
  %926 = vmatprep.subr.mxu0 0.0
  %927 = vmatpush2.msra.mxu0 0.0
  %928 = vmatprep.subr.mxu0 0.0
  %929 = vmatpush2.msra.mxu0 0.0
  %930 = vmatprep.subr.mxu0 0.0
  %931 = vmatpush2.msra.mxu0 0.0
  %932 = vmatprep.subr.mxu0 0.0
  %933 = vmatpush2.msra.mxu0 0.0
  %934 = vmatprep.subr.mxu0 0.0
  %935 = vmatpush2.msra.mxu0 0.0
  %936 = vmatprep.subr.mxu0 0.0
  %937 = vmatpush2.msra.mxu0 0.0
  %938 = vmatprep.subr.mxu0 0.0
  %939 = vmatpush2.msra.mxu0 0.0
  %940 = vmatprep.subr.mxu0 0.0
  %941 = vmatpush2.msra.mxu0 0.0
  %942 = vmatprep.subr.mxu0 0.0
  %943 = vmatpush2.msra.mxu0 0.0
  %944 = vmatprep.subr.mxu0 0.0
  %945 = vmatpush2.msra.mxu0 0.0
  %946 = vmatprep.subr.mxu0 0.0
  %947 = vmatpush2.msra.mxu0 0.0
  %948 = vmatprep.subr.mxu0 0.0
  %949 = vmatpush2.msra.mxu0 0.0
  %950 = vmatprep.mubr.f32.mxu0 0.0
  %951 = vmatmul.mubr.f32.gmra.mxu0 %v884
  %v952 = vpop.f32.mrf.mxu0
  %v953 = vadd.f32 0.0, %v952
  %v954 = vpop.f32.mrf.mxu0
  %955 = vdwg.mxu0
  %v956 = vadd.f32 %v882, %v953
  %v957 = vxor.u32 %v956, 2147483648
  %v958 = vmul.f32 %v957, 1.442695
  %v959 = vpow.pop %v958
  %v960 = vadd.f32 %v959, 1.0
  %v961 = vrcp.pop %v960
  %v962 = vmul.f32 1.0, %v961
  %v963 = vtanh.pop %v956
  %965 = vrot.lane.b32.xlu0 %v879, 32
  %v966 = vpop.permute.xlu0 %965
  %v968 = vmul.f32 %v962, %v966
  %970 = vrot.lane.b32.xlu0 %v963, 64
  %v971 = vpop.permute.xlu0 %970
  %v973 = vmul.f32 %v962, %v971
  %975 = vrot.lane.b32.xlu0 %v973, 32
  %v976 = vpop.permute.xlu0 %975
  %v978 = vadd.f32 %v968, %v976
  %v979 = vtanh.pop %v978
  %981 = vrot.lane.b32.xlu0 %v979, 64
  %v982 = vpop.permute.xlu0 %981
  %v984 = vmul.f32 %v962, %v982
  %v985 = vstv %s877
  %vm986 = vcmp.lt.s32.totalorder %v985, %v32
  %v987 = vsel %vm986, 1, 0
  %988 = vset.pattern.permute.xlu0 0
  %989 = vperm.xlu0 %988, %v987
  %v990 = vpop.permute.xlu0 %989
  %vm991 = vcmp.eq.s32.totalorder %v990, 1
  %992 = vrot.lane.b32.xlu0 %v878, 96
  %v993 = vpop.permute.xlu0 %992
  %v995 = vsel %vm991, %v984, %v993
  %997 = vrot.lane.b32.xlu0 %v995, 32
  %v998 = vpop.permute.xlu0 %997
  %1000 = vst.msk [vmem:[#allocation2] sm:$0xff] %vm42, %v998
  %v1001 = vsel %vm991, %v978, %v966
  %1003 = vrot.lane.b32.xlu0 %v1001, 96
  %v1004 = vpop.permute.xlu0 %1003
  %1006 = vst.msk [vmem:[#allocation3] sm:$0xff] %vm42, %v1004
  %v1007 = vsel %vm991, %v984, 0.0
  %v1008 = vpack.c.bf16 %v1007, %v1007
  %v1010 = vunpack.c.l.b16 %v1008
  %v1011 = vpack.c.b16 %v1010, %v1010
  %1012 = vrot.lane.b32.xlu0 %v1011, 32
  %v1013 = vpop.permute.xlu0 %1012
  %s1015 = scalar_lea.vmem %s5, 24
  %1016 = vst.msk [vmem:[%s1015] sm:$0xf] %vm175, %v1013
  %s1017 = sadd.s32 %s37, 7
  %v1018 = vld [vmem:[#allocation2] sm:$0xff]
  %v1019 = vld [vmem:[#allocation3] sm:$0xff]
  %s1020 = scalar_lea.vmem %s0, 28
  %v1021 = vld [vmem:[%s1020] sm:$0xf]
  %v1022 = vunpack.c.l.bf16 %v1021
  %v1024 = vsel %vm42, %v1018, 0
  %1026 = vmatprep.subr.mxu0 0.0
  %1027 = vmatpush1.msra.mxu0 0.0
  %1028 = vmatprep.subr.mxu0 0.0
  %1029 = vmatpush1.msra.mxu0 0.0
  %1030 = vmatprep.subr.mxu0 0.0
  %1031 = vmatpush1.msra.mxu0 0.0
  %1032 = vmatprep.subr.mxu0 0.0
  %1033 = vmatpush1.msra.mxu0 0.0
  %1034 = vmatprep.subr.mxu0 0.0
  %1035 = vmatpush1.msra.mxu0 0.0
  %1036 = vmatprep.subr.mxu0 0.0
  %1037 = vmatpush1.msra.mxu0 0.0
  %1038 = vmatprep.subr.mxu0 0.0
  %1039 = vmatpush1.msra.mxu0 0.0
  %1040 = vmatprep.subr.mxu0 0.0
  %1041 = vmatpush1.msra.mxu0 0.0
  %1042 = vmatprep.subr.mxu0 0.0
  %1043 = vmatpush1.msra.mxu0 0.0
  %1044 = vmatprep.subr.mxu0 0.0
  %1045 = vmatpush1.msra.mxu0 0.0
  %1046 = vmatprep.subr.mxu0 0.0
  %1047 = vmatpush1.msra.mxu0 0.0
  %1048 = vmatprep.subr.mxu0 0.0
  %1049 = vmatpush1.msra.mxu0 0.0
  %1050 = vmatprep.subr.mxu0 0.0
  %1051 = vmatpush1.msra.mxu0 %v36
  %1052 = vmatprep.subr.mxu0 0.0
  %1053 = vmatpush1.msra.mxu0 %v35
  %1054 = vmatprep.subr.mxu0 0.0
  %1055 = vmatpush1.msra.mxu0 %v34
  %1056 = vmatprep.subr.mxu0 0.0
  %1057 = vmatpush1.msra.mxu0 %v33
  %1058 = vmatprep.subr.mxu0 0.0
  %1059 = vmatpush2.msra.mxu0 0.0
  %1060 = vmatprep.subr.mxu0 0.0
  %1061 = vmatpush2.msra.mxu0 0.0
  %1062 = vmatprep.subr.mxu0 0.0
  %1063 = vmatpush2.msra.mxu0 0.0
  %1064 = vmatprep.subr.mxu0 0.0
  %1065 = vmatpush2.msra.mxu0 0.0
  %1066 = vmatprep.subr.mxu0 0.0
  %1067 = vmatpush2.msra.mxu0 0.0
  %1068 = vmatprep.subr.mxu0 0.0
  %1069 = vmatpush2.msra.mxu0 0.0
  %1070 = vmatprep.subr.mxu0 0.0
  %1071 = vmatpush2.msra.mxu0 0.0
  %1072 = vmatprep.subr.mxu0 0.0
  %1073 = vmatpush2.msra.mxu0 0.0
  %1074 = vmatprep.subr.mxu0 0.0
  %1075 = vmatpush2.msra.mxu0 0.0
  %1076 = vmatprep.subr.mxu0 0.0
  %1077 = vmatpush2.msra.mxu0 0.0
  %1078 = vmatprep.subr.mxu0 0.0
  %1079 = vmatpush2.msra.mxu0 0.0
  %1080 = vmatprep.subr.mxu0 0.0
  %1081 = vmatpush2.msra.mxu0 0.0
  %1082 = vmatprep.subr.mxu0 0.0
  %1083 = vmatpush2.msra.mxu0 0.0
  %1084 = vmatprep.subr.mxu0 0.0
  %1085 = vmatpush2.msra.mxu0 0.0
  %1086 = vmatprep.subr.mxu0 0.0
  %1087 = vmatpush2.msra.mxu0 0.0
  %1088 = vmatprep.subr.mxu0 0.0
  %1089 = vmatpush2.msra.mxu0 0.0
  %1090 = vmatprep.mubr.f32.mxu0 0.0
  %1091 = vmatmul.mubr.f32.gmra.mxu0 %v1024
  %v1092 = vpop.f32.mrf.mxu0
  %v1093 = vadd.f32 0.0, %v1092
  %v1094 = vpop.f32.mrf.mxu0
  %1095 = vdwg.mxu0
  %v1096 = vadd.f32 %v1022, %v1093
  %v1097 = vxor.u32 %v1096, 2147483648
  %v1098 = vmul.f32 %v1097, 1.442695
  %v1099 = vpow.pop %v1098
  %v1100 = vadd.f32 %v1099, 1.0
  %v1101 = vrcp.pop %v1100
  %v1102 = vmul.f32 1.0, %v1101
  %v1103 = vtanh.pop %v1096
  %1105 = vrot.lane.b32.xlu0 %v1019, 32
  %v1106 = vpop.permute.xlu0 %1105
  %v1108 = vmul.f32 %v1102, %v1106
  %1110 = vrot.lane.b32.xlu0 %v1103, 64
  %v1111 = vpop.permute.xlu0 %1110
  %v1113 = vmul.f32 %v1102, %v1111
  %1115 = vrot.lane.b32.xlu0 %v1113, 32
  %v1116 = vpop.permute.xlu0 %1115
  %v1118 = vadd.f32 %v1108, %v1116
  %v1119 = vtanh.pop %v1118
  %1121 = vrot.lane.b32.xlu0 %v1119, 64
  %v1122 = vpop.permute.xlu0 %1121
  %v1124 = vmul.f32 %v1102, %v1122
  %v1125 = vstv %s1017
  %vm1126 = vcmp.lt.s32.totalorder %v1125, %v32
  %v1127 = vsel %vm1126, 1, 0
  %1128 = vset.pattern.permute.xlu0 0
  %1129 = vperm.xlu0 %1128, %v1127
  %v1130 = vpop.permute.xlu0 %1129
  %vm1131 = vcmp.eq.s32.totalorder %v1130, 1
  %1132 = vrot.lane.b32.xlu0 %v1018, 96
  %v1133 = vpop.permute.xlu0 %1132
  %v1135 = vsel %vm1131, %v1124, %v1133
  %1137 = vrot.lane.b32.xlu0 %v1135, 32
  %v1138 = vpop.permute.xlu0 %1137
  %1140 = vst.msk [vmem:[#allocation2] sm:$0xff] %vm42, %v1138
  %v1141 = vsel %vm1131, %v1118, %v1106
  %1143 = vrot.lane.b32.xlu0 %v1141, 96
  %v1144 = vpop.permute.xlu0 %1143
  %1146 = vst.msk [vmem:[#allocation3] sm:$0xff] %vm42, %v1144
  %v1147 = vsel %vm1131, %v1124, 0.0
  %v1148 = vpack.c.bf16 %v1147, %v1147
  %v1150 = vunpack.c.l.b16 %v1148
  %v1151 = vpack.c.b16 %v1150, %v1150
  %1152 = vrot.lane.b32.xlu0 %v1151, 32
  %v1153 = vpop.permute.xlu0 %1152
  %s1155 = scalar_lea.vmem %s5, 28
  %1156 = vst.msk [vmem:[%s1155] sm:$0xf] %vm175, %v1153
  // Predicated region
  $region26: #{_forward_core.4} parent=0 // pred_check
    %p1157 = pneg %p23
  $region27: #{_forward_core.4} parent=0 // pred_check_branch
    %1159 = sbr.rel (%p1157) target = $region29
  $region28: #{_forward_core.4} parent=0 // pred_region
    %v1160 = vld [vmem:[#allocation2] sm:$0xff]
    %1161 = vst.msk [vmem:[%s6] sm:$0xff] %vm42, %v1160
    %v1162 = vld [vmem:[#allocation3] sm:$0xff]
    %1163 = vst.msk [vmem:[%s7] sm:$0xff] %vm42, %v1162
  $region29: #{_forward_core.4} parent=0 // pred_fallthru
    _
  // Predicated region
  $region30: #{_forward_core.4} parent=0 // pred_check
    _
  $region31: #{_forward_core.4} parent=0 // pred_check_branch
    %1165 = sbr.rel (0) target = $region33
  $region32: #{_forward_core.4} parent=0 // pred_region
    _
  $region33: #{_forward_core.4} parent=0 // pred_fallthru
    _
  // Predicated region
  $region34: #{_forward_core.4} parent=0 // pred_check
    _
  $region35: #{_forward_core.4} parent=0 // pred_check_branch
    %1167 = sbr.rel (0) target = $region37
  $region36: #{_forward_core.4} parent=0 // pred_region
    _
  $region37: #{_forward_core.4} parent=0 // pred_fallthru
    _
  // Predicated region
  $region38: #{_forward_core.4} parent=0 // pred_check
    _
  $region39: #{_forward_core.4} parent=0 // pred_check_branch
    %1169 = sbr.rel (0) target = $region41
  $region40: #{_forward_core.4} parent=0 // pred_region
    _
  $region41: #{_forward_core.4} parent=0 // pred_fallthru
    _
  // Predicated region
  $region42: #{_forward_core.4} parent=0 // pred_check
    _
  $region43: #{_forward_core.4} parent=0 // pred_check_branch
    %1171 = sbr.rel (0) target = $region45
  $region44: #{_forward_core.4} parent=0 // pred_region
    _
  $region45: #{_forward_core.4} parent=0 // pred_fallthru
    _
  // Predicated region
  $region46: #{_forward_core.4} parent=0 // pred_check
    _
  $region47: #{_forward_core.4} parent=0 // pred_check_branch
    %1173 = sbr.rel (0) target = $region49
  $region48: #{_forward_core.4} parent=0 // pred_region
    _
  $region49: #{_forward_core.4} parent=0 // pred_fallthru
    _
  // Predicated region
  $region50: #{_forward_core.4} parent=0 // pred_check
    _
  $region51: #{_forward_core.4} parent=0 // pred_check_branch
    %1175 = sbr.rel (0) target = $region53
  $region52: #{_forward_core.4} parent=0 // pred_region
    _
  $region53: #{_forward_core.4} parent=0 // pred_fallthru
    _

</llo_original>
